<compile_context>
chip_gen: v5e
topology: v5e:2x2
jax: 0.10.0
libtpu: 0.0.40
codegen_flags: <defaults>
</compile_context>

<pallas_src>
import functools

import jax
import jax.numpy as jnp
from jax.experimental import pallas as pl
from jax.experimental.pallas import tpu as pltpu


def autopad(k, p=None, d=1):
    if d > 1:
        k = d * (k - 1) + 1 if isinstance(k, int) else [d * (x - 1) + 1 for x in k]
    if p is None:
        p = k // 2 if isinstance(k, int) else [x // 2 for x in k]
    return p


def _conv_bn_silu_kernel(xm_ref, xh_ref, w_ref, scale_ref, bias_ref, o_ref,
                         *, k, th, wo, c1, c2, fold_taps, apply_act, use_halo):
    """One (batch, row-tile) grid step.

    xm_ref:    (TH or Hp, Wp, C1)  main row tile of the padded NHWC input
    xh_ref:    (k-1 or 1, Wp, C1)  halo rows just below the main tile (maybe dummy)
    w_ref:     (C2, k*k*C1)        folded conv weights, column = (dy*k + dx)*C1 + c
    scale_ref: (C2, 1) f32         folded BN scale  = gamma / sqrt(var + eps)
    bias_ref:  (C2, 1) f32         folded BN bias   = beta - mean * scale
    o_ref:     (C2, TH*Wo)         output tile, channels-major (NCHW-flat), lane-dense
    """
    if use_halo:
        x = jnp.concatenate([xm_ref[...], xh_ref[...]], axis=0)  # (th + k - 1, Wp, C1)
    else:
        x = xm_ref[...]
    m = th * wo

    if fold_taps:
        # Small C1: fold the k*k taps into the contraction (K = k*k*C1) -> one matmul.
        taps = [x[dy:dy + th, dx:dx + wo, :] for dy in range(k) for dx in range(k)]
        patch = taps[0] if len(taps) == 1 else jnp.concatenate(taps, axis=-1)
        patch = patch.reshape(m, k * k * c1)                       # (M, K)
        acc = jax.lax.dot_general(                                 # (C2,K).(M,K)^T -> (C2,M)
            w_ref[...], patch, (((1,), (1,)), ((), ())),
            preferred_element_type=jnp.float32)
    else:
        # Large C1: per-tap matmuls; K = C1 already saturates the MXU contraction.
        acc = jnp.zeros((c2, m), dtype=jnp.float32)
        for dy in range(k):
            for dx in range(k):
                tap = dy * k + dx
                patch = x[dy:dy + th, dx:dx + wo, :].reshape(m, c1)
                acc = acc + jax.lax.dot_general(
                    w_ref[:, tap * c1:(tap + 1) * c1], patch,
                    (((1,), (1,)), ((), ())),
                    preferred_element_type=jnp.float32)

    y = acc * scale_ref[...] + bias_ref[...]       # folded BatchNorm affine (f32)
    if apply_act:
        y = y * jax.nn.sigmoid(y)                  # SiLU (EUP)
    o_ref[...] = y.astype(o_ref.dtype)


def _pick_tile_h(ho, wo, k, *, forced, budget_bytes, wp, c1, c2,
                 in_itemsize, out_itemsize, fold_taps):
    """Pick the output-row tile size TH (divides Ho, lane-dense output block)."""
    halo = k - 1

    def valid(th):
        if th == ho:
            return True
        if ho % th or (th * wo) % 128:
            return False
        if halo > 0 and th % halo:
            return False
        return True

    def est(th):
        rows = th + halo
        inp = 2 * rows * wp * c1 * in_itemsize               # main + halo, double-buffered
        out = 2 * c2 * th * wo * out_itemsize                # output tile, double-buffered
        wgt = 2 * (c2 * k * k * c1 * in_itemsize + 2 * c2 * 4)
        acc = c2 * th * wo * 4                               # f32 accumulator value
        pat = th * wo * k * k * c1 * in_itemsize if fold_taps else th * wo * c1 * in_itemsize
        xcp = rows * wp * c1 * in_itemsize                   # concatenated x value
        return inp + out + wgt + acc + pat + xcp + (2 << 20)  # headroom

    if forced is not None:
        if not valid(forced):
            raise ValueError(f"tile_h={forced} invalid for ho={ho}, wo={wo}, k={k}")
        return forced

    cands = [t for t in range(8, ho, 8) if valid(t)]
    fitting = [t for t in cands if est(t) <= budget_bytes]
    if fitting:
        return max(fitting)            # biggest tile that fits -> best pipelining
    if not cands or est(ho) <= budget_bytes:
        return ho                      # whole padded image per batch element
    return min(cands)                  # smallest tile; raised vmem limit covers it


def conv_bn_silu(x_nchw, weight, gamma, beta, running_mean, running_var,
                 *, k=1, s=1, p=None, g=1, d=1, eps=1e-5, act=True,
                 compute_dtype=jnp.bfloat16, tile_h=None):
    """Equivalent of ultralytics Conv(c1, c2, k, s=1).forward(x) in eval mode."""
    if s != 1 or g != 1 or d != 1:
        # TODO(synk): stride > 1, groups > 1 and dilation > 1 are not implemented.
        raise NotImplementedError("only s=1, g=1, d=1 supported")

    n, c1, h, w = x_nchw.shape
    c2 = weight.shape[0]
    pad = autopad(k, p, d)
    ho = h + 2 * pad - k + 1
    wo = w + 2 * pad - k + 1
    hp = h + 2 * pad
    wp = w + 2 * pad

    cdt = jnp.dtype(compute_dtype)
    odt = jnp.dtype(x_nchw.dtype)

    # ---- wrapper glue (layout, zero pad, weight fold, BN fold) ----
    # NOTE: in a full NHWC/bf16 network the input transpose/pad would live outside
    # the hot path; the kernel already writes NCHW(-flat), so no output transpose.
    x_nhwc = jnp.transpose(x_nchw.astype(cdt), (0, 2, 3, 1))
    x_pad = jnp.pad(x_nhwc, ((0, 0), (pad, pad), (pad, pad), (0, 0)))

    # OIHW (C2, C1, k, k) -> (C2, k*k*C1), column = (dy*k + dx)*C1 + c.
    w2 = jnp.transpose(weight, (0, 2, 3, 1)).reshape(c2, k * k * c1).astype(cdt)

    # Fold BatchNorm (inference) into per-channel scale / bias, kept in f32.
    scale = gamma.astype(jnp.float32) / jnp.sqrt(running_var.astype(jnp.float32) + eps)
    bias = beta.astype(jnp.float32) - running_mean.astype(jnp.float32) * scale
    scale = scale.reshape(c2, 1)
    bias = bias.reshape(c2, 1)

    fold_taps = (k * k * c1) <= 1152

    # ---- VMEM budget, re-derived per chip (v7x: 64 MiB/TC, v5e/v6e: 128 MiB) ----
    try:
        vmem_cap = int(pltpu.get_tpu_info().vmem_capacity_bytes)
    except Exception:
        vmem_cap = 64 * 1024 * 1024
    vmem_limit = max(32 * 1024 * 1024, min(int(0.75 * vmem_cap), 100 * 1024 * 1024))

    th = _pick_tile_h(ho, wo, k, forced=tile_h, budget_bytes=vmem_limit // 2,
                      wp=wp, c1=c1, c2=c2, in_itemsize=cdt.itemsize,
                      out_itemsize=odt.itemsize, fold_taps=fold_taps)
    tiled = th < ho
    n_tiles = ho // th
    halo = k - 1
    use_halo = tiled and halo > 0

    if tiled:
        xm_spec = pl.BlockSpec((None, th, wp, c1), lambda b, t: (b, t, 0, 0))
    else:
        xm_spec = pl.BlockSpec((None, hp, wp, c1), lambda b, t: (b, 0, 0, 0))

    if use_halo:
        ratio = th // halo   # halo block index (t+1)*ratio -> rows start at (t+1)*th
        xh_spec = pl.BlockSpec((None, halo, wp, c1),
                               lambda b, t: (b, (t + 1) * ratio, 0, 0))
    else:
        xh_spec = pl.BlockSpec((None, 1, wp, c1), lambda b, t: (b, 0, 0, 0))  # dummy

    kernel = functools.partial(
        _conv_bn_silu_kernel, k=k, th=th, wo=wo, c1=c1, c2=c2,
        fold_taps=fold_taps, apply_act=bool(act), use_halo=use_halo)

    cost = pl.CostEstimate(
        flops=2 * n * ho * wo * k * k * c1 * c2,
        transcendentals=(n * ho * wo * c2) if act else 0,
        bytes_accessed=(n * hp * wp * c1 + c2 * k * k * c1) * cdt.itemsize
                       + n * c2 * ho * wo * odt.itemsize + 2 * c2 * 4,
    )

    out_flat = pl.pallas_call(
        kernel,
        out_shape=jax.ShapeDtypeStruct((n, c2, ho * wo), odt),
        grid_spec=pltpu.PrefetchScalarGridSpec(
            num_scalar_prefetch=0,
            grid=(n, n_tiles),
            in_specs=[
                xm_spec,                                               # main row tile
                xh_spec,                                               # halo rows
                pl.BlockSpec((c2, k * k * c1), lambda b, t: (0, 0)),   # folded weights
                pl.BlockSpec((c2, 1), lambda b, t: (0, 0)),            # BN scale (f32)
                pl.BlockSpec((c2, 1), lambda b, t: (0, 0)),            # BN bias (f32)
            ],
            out_specs=pl.BlockSpec((None, c2, th * wo), lambda b, t: (b, 0, t)),
        ),
        compiler_params=pltpu.CompilerParams(
            dimension_semantics=("parallel", "parallel"),
            vmem_limit_bytes=vmem_limit),
        cost_estimate=cost,
    )(x_pad, x_pad, w2, scale, bias)

    # (N, C2, Ho*Wo) -> (N, C2, Ho, Wo): pure metadata reshape, no transpose needed.
    return out_flat.reshape(n, c2, ho, wo)


def _reference(x, weight, gamma, beta, running_mean, running_var, *, k, eps=1e-5):
    pad = autopad(k)
    y = jax.lax.conv_general_dilated(
        x.astype(jnp.float32), weight.astype(jnp.float32),
        window_strides=(1, 1), padding=[(pad, pad), (pad, pad)],
        dimension_numbers=("NCHW", "OIHW", "NCHW"))
    scale = gamma / jnp.sqrt(running_var + eps)
    bias = beta - running_mean * scale
    y = y * scale[None, :, None, None] + bias[None, :, None, None]
    return y * jax.nn.sigmoid(y)


if __name__ == "__main__":
    key = jax.random.PRNGKey(0)
    kx, kw, kg, kb, km, kv = jax.random.split(key, 6)

    N, C1, H, W = 2, 4, 32, 32
    C2, K = 8, 3

    x = jax.random.normal(kx, (N, C1, H, W), dtype=jnp.float32)
    weight = 0.1 * jax.random.normal(kw, (C2, C1, K, K), dtype=jnp.float32)  # OIHW, bias=False
    gamma = 1.0 + 0.1 * jax.random.normal(kg, (C2,), dtype=jnp.float32)
    beta = 0.1 * jax.random.normal(kb, (C2,), dtype=jnp.float32)
    running_mean = 0.1 * jax.random.normal(km, (C2,), dtype=jnp.float32)
    running_var = 0.5 + jax.random.uniform(kv, (C2,), dtype=jnp.float32)

    ref3 = _reference(x, weight, gamma, beta, running_mean, running_var, k=K)

    # 1) f32 compute, explicit row tiling (two 16-row tiles, halo path) -> tight check.
    out_f32 = conv_bn_silu(x, weight, gamma, beta, running_mean, running_var,
                           k=K, compute_dtype=jnp.float32, tile_h=16)
    out_f32 = jax.block_until_ready(out_f32)
    assert out_f32.shape == (N, C2, H, W)
    assert jnp.allclose(out_f32, ref3, atol=5e-3, rtol=5e-3), "f32 tiled mismatch"

    # 2) bf16 I/O with f32 accumulation, automatic VMEM-budgeted tile selection.
    out_bf = conv_bn_silu(x, weight, gamma, beta, running_mean, running_var,
                          k=K, compute_dtype=jnp.bfloat16)
    out_bf = jax.block_until_ready(out_bf)
    assert jnp.allclose(out_bf, ref3, atol=7e-2, rtol=7e-2), "bf16 auto mismatch"

    # 3) default Conv() config: k=1 pointwise conv (no halo), smaller spatial.
    x1 = jax.random.normal(kx, (2, 4, 16, 16), dtype=jnp.float32)
    w1 = 0.1 * jax.random.normal(kw, (C2, C1, 1, 1), dtype=jnp.float32)
    ref1 = _reference(x1, w1, gamma, beta, running_mean, running_var, k=1)
    out1 = conv_bn_silu(x1, w1, gamma, beta, running_mean, running_var,
                        k=1, compute_dtype=jnp.float32)
    out1 = jax.block_until_ready(out1)
    assert out1.shape == (2, C2, 16, 16)
    assert jnp.allclose(out1, ref1, atol=5e-3, rtol=5e-3), "k=1 mismatch"

    print("KERNEL_OK")
</pallas_src>

<mosaic_0001>
module attributes {stable_mosaic.version = 11 : i64} {
  func.func @_conv_bn_silu_kernel(%arg0: i32, %arg1: i32, %arg2: memref<1x16x34x4xf32, #tpu.memory_space<vmem>>, %arg3: memref<1x2x34x4xf32, #tpu.memory_space<vmem>>, %arg4: memref<8x36xf32, #tpu.memory_space<vmem>>, %arg5: memref<8x1xf32, #tpu.memory_space<vmem>>, %arg6: memref<8x1xf32, #tpu.memory_space<vmem>>, %arg7: memref<1x8x512xf32, #tpu.memory_space<vmem>>) attributes {dimension_semantics = [#tpu.dimension_semantics<parallel>, #tpu.dimension_semantics<parallel>], iteration_bounds = array<i64: 2, 2>, scalar_prefetch = 0 : i64, scratch_operands = 0 : i64, tpu.core_type = #tpu.core_type<tc>, window_params = [{transform_indices = @transform_0, window_bounds = array<i64: 1, 16, 34, 4>}, {transform_indices = @transform_1, window_bounds = array<i64: 1, 2, 34, 4>}, {pipeline_mode = #tpu.pipeline_mode<synchronous>, transform_indices = @transform_2, window_bounds = array<i64: 8, 36>}, {pipeline_mode = #tpu.pipeline_mode<synchronous>, transform_indices = @transform_3, window_bounds = array<i64: 8, 1>}, {pipeline_mode = #tpu.pipeline_mode<synchronous>, transform_indices = @transform_4, window_bounds = array<i64: 8, 1>}, {transform_indices = @transform_5, window_bounds = array<i64: 1, 8, 512>}]} {
    %c0 = arith.constant 0 : index
    %c0_0 = arith.constant 0 : index
    %c0_1 = arith.constant 0 : index
    %c0_2 = arith.constant 0 : index
    %0 = vector.load %arg2[%c0, %c0_0, %c0_1, %c0_2] : memref<1x16x34x4xf32, #tpu.memory_space<vmem>>, vector<1x16x34x4xf32>
    %1 = vector.shape_cast %0 : vector<1x16x34x4xf32> to vector<16x34x4xf32>
    %c0_3 = arith.constant 0 : index
    %c0_4 = arith.constant 0 : index
    %c0_5 = arith.constant 0 : index
    %c0_6 = arith.constant 0 : index
    %2 = vector.load %arg3[%c0_3, %c0_4, %c0_5, %c0_6] : memref<1x2x34x4xf32, #tpu.memory_space<vmem>>, vector<1x2x34x4xf32>
    %3 = vector.shape_cast %2 : vector<1x2x34x4xf32> to vector<2x34x4xf32>
    %4 = tpu.concatenate %1, %3 in 0 : vector<16x34x4xf32>, vector<2x34x4xf32> -> vector<18x34x4xf32>
    %5 = vector.extract_strided_slice %4 {offsets = [0, 0, 0], sizes = [16, 32, 4], strides = [1, 1, 1]} : vector<18x34x4xf32> to vector<16x32x4xf32>
    %6 = vector.extract_strided_slice %4 {offsets = [0, 1, 0], sizes = [16, 32, 4], strides = [1, 1, 1]} : vector<18x34x4xf32> to vector<16x32x4xf32>
    %7 = vector.extract_strided_slice %4 {offsets = [0, 2, 0], sizes = [16, 32, 4], strides = [1, 1, 1]} : vector<18x34x4xf32> to vector<16x32x4xf32>
    %8 = vector.extract_strided_slice %4 {offsets = [1, 0, 0], sizes = [16, 32, 4], strides = [1, 1, 1]} : vector<18x34x4xf32> to vector<16x32x4xf32>
    %9 = vector.extract_strided_slice %4 {offsets = [1, 1, 0], sizes = [16, 32, 4], strides = [1, 1, 1]} : vector<18x34x4xf32> to vector<16x32x4xf32>
    %10 = vector.extract_strided_slice %4 {offsets = [1, 2, 0], sizes = [16, 32, 4], strides = [1, 1, 1]} : vector<18x34x4xf32> to vector<16x32x4xf32>
    %11 = vector.extract_strided_slice %4 {offsets = [2, 0, 0], sizes = [16, 32, 4], strides = [1, 1, 1]} : vector<18x34x4xf32> to vector<16x32x4xf32>
    %12 = vector.extract_strided_slice %4 {offsets = [2, 1, 0], sizes = [16, 32, 4], strides = [1, 1, 1]} : vector<18x34x4xf32> to vector<16x32x4xf32>
    %13 = vector.extract_strided_slice %4 {offsets = [2, 2, 0], sizes = [16, 32, 4], strides = [1, 1, 1]} : vector<18x34x4xf32> to vector<16x32x4xf32>
    %14 = tpu.concatenate %5, %6, %7, %8, %9, %10, %11, %12, %13 in 2 : vector<16x32x4xf32>, vector<16x32x4xf32>, vector<16x32x4xf32>, vector<16x32x4xf32>, vector<16x32x4xf32>, vector<16x32x4xf32>, vector<16x32x4xf32>, vector<16x32x4xf32>, vector<16x32x4xf32> -> vector<16x32x36xf32>
    %15 = vector.shape_cast %14 : vector<16x32x36xf32> to vector<512x36xf32>
    %c0_7 = arith.constant 0 : index
    %c0_8 = arith.constant 0 : index
    %16 = vector.load %arg4[%c0_7, %c0_8] : memref<8x36xf32, #tpu.memory_space<vmem>>, vector<8x36xf32>
    %cst = arith.constant dense<0.000000e+00> : vector<8x512xf32>
    %17 = tpu.matmul %16, %15, %cst {dimension_numbers = #tpu.dot_dimension_numbers<[1], [1], [0], [0], [0, 0, 1, 0], [], []>} : vector<8x36xf32>, vector<512x36xf32>, vector<8x512xf32> -> vector<8x512xf32>
    %c0_9 = arith.constant 0 : index
    %c0_10 = arith.constant 0 : index
    %18 = vector.load %arg5[%c0_9, %c0_10] : memref<8x1xf32, #tpu.memory_space<vmem>>, vector<8x1xf32>
    %19 = vector.broadcast %18 : vector<8x1xf32> to vector<8x512xf32>
    %20 = arith.mulf %17, %19 : vector<8x512xf32>
    %c0_11 = arith.constant 0 : index
    %c0_12 = arith.constant 0 : index
    %21 = vector.load %arg6[%c0_11, %c0_12] : memref<8x1xf32, #tpu.memory_space<vmem>>, vector<8x1xf32>
    %22 = vector.broadcast %21 : vector<8x1xf32> to vector<8x512xf32>
    %23 = arith.addf %20, %22 : vector<8x512xf32>
    %24 = arith.negf %23 : vector<8x512xf32>
    %25 = math.exp %24 : vector<8x512xf32>
    %cst_13 = arith.constant 1.000000e+00 : f32
    %26 = vector.broadcast %cst_13 : f32 to vector<8x512xf32>
    %27 = arith.addf %26, %25 : vector<8x512xf32>
    %28 = arith.divf %26, %27 : vector<8x512xf32>
    %29 = arith.mulf %23, %28 : vector<8x512xf32>
    %c0_14 = arith.constant 0 : index
    %c0_15 = arith.constant 0 : index
    %c0_16 = arith.constant 0 : index
    %30 = vector.load %arg7[%c0_14, %c0_15, %c0_16] : memref<1x8x512xf32, #tpu.memory_space<vmem>>, vector<1x8x512xf32>
    %31 = vector.shape_cast %30 : vector<1x8x512xf32> to vector<8x512xf32>
    %32 = vector.shape_cast %29 : vector<8x512xf32> to vector<1x8x512xf32>
    tpu.vector_store %arg7[%c0_14, %c0_15, %c0_16], %32 {strides = array<i32>} : memref<1x8x512xf32, #tpu.memory_space<vmem>>, vector<1x8x512xf32>,
    return
  }
  func.func @transform_0(%arg0: i32, %arg1: i32) -> (i32, i32, i32, i32) {
    %c0_i32 = arith.constant 0 : i32
    %c0_i32_0 = arith.constant 0 : i32
    %c0_i32_1 = arith.constant 0 : i32
    return %arg0, %arg1, %c0_i32, %c0_i32_0 : i32, i32, i32, i32
  }
  func.func @transform_1(%arg0: i32, %arg1: i32) -> (i32, i32, i32, i32) {
    %c1_i32 = arith.constant 1 : i32
    %0 = arith.addi %arg1, %c1_i32 : i32
    %c8_i32 = arith.constant 8 : i32
    %1 = arith.muli %0, %c8_i32 : i32
    %c0_i32 = arith.constant 0 : i32
    %c0_i32_0 = arith.constant 0 : i32
    %c0_i32_1 = arith.constant 0 : i32
    return %arg0, %1, %c0_i32, %c0_i32_0 : i32, i32, i32, i32
  }
  func.func @transform_2(%arg0: i32, %arg1: i32) -> (i32, i32) {
    %c0_i32 = arith.constant 0 : i32
    %c0_i32_0 = arith.constant 0 : i32
    %c0_i32_1 = arith.constant 0 : i32
    return %c0_i32, %c0_i32_0 : i32, i32
  }
  func.func @transform_3(%arg0: i32, %arg1: i32) -> (i32, i32) {
    %c0_i32 = arith.constant 0 : i32
    %c0_i32_0 = arith.constant 0 : i32
    %c0_i32_1 = arith.constant 0 : i32
    return %c0_i32, %c0_i32_0 : i32, i32
  }
  func.func @transform_4(%arg0: i32, %arg1: i32) -> (i32, i32) {
    %c0_i32 = arith.constant 0 : i32
    %c0_i32_0 = arith.constant 0 : i32
    %c0_i32_1 = arith.constant 0 : i32
    return %c0_i32, %c0_i32_0 : i32, i32
  }
  func.func @transform_5(%arg0: i32, %arg1: i32) -> (i32, i32, i32) {
    %c0_i32 = arith.constant 0 : i32
    %c0_i32_0 = arith.constant 0 : i32
    return %arg0, %c0_i32, %arg1 : i32, i32, i32
  }
}

</mosaic_0001>

<llo_original>
// kernel: tpu_custom_call.1
$region0: #{tpu_custom_call.1}
  #allocation0 [shape = 'u32[]', space=smem, size = 0x4, offset = 0x4, fixed_abs, tag = 'smem constant byte address 0x4 - core index']
  #allocation1 [shape = 'u32[72,128]{1,0:T(1,128)}', space=vmem, size = 0x9000, scoped, tag = 'internal scratch']
  %s0 = inlined_call_operand.vmem [shape: f32[2,34,34,4], index: 0, kind: input, shape index: {}]
  %s1 = inlined_call_operand.vmem [shape: f32[2,34,34,4], index: 1, kind: input, shape index: {}]
  %s2 = inlined_call_operand.vmem [shape: f32[8,36], index: 2, kind: input, shape index: {}]
  %s3 = inlined_call_operand.vmem [shape: f32[8,1], index: 3, kind: input, shape index: {}]
  %s4 = inlined_call_operand.vmem [shape: f32[8,1], index: 4, kind: input, shape index: {}]
  %s5 = inlined_call_operand.hbm [shape: f32[2,8,1024], index: 5, kind: output, shape index: {}]
  %s6 = sld [smem:[#allocation0]]
  $region53: #{tpu_custom_call.1} parent=0
    _
  %s8 = ssub.s32 1, %s6
  %s9 = scalar_select 0, %s8, %s6
  $region1: #{tpu_custom_call.1} parent=0
    #allocation2 [shape = 'u8[32768]{0}', space=vmem, size = 0x8000, scoped, tag = 'output window, operand 0']
    #allocation3 [shape = 's32[2]{0}', space=sflag, size = 0x8, scoped, tag = 'scoped memory for tpu_custom_call.1']
    %10 = vsyncpa [#allocation3], 0
    %s11 = scalar_lea.sflag [#allocation3], 1
    %12 = vsyncpa %s11, 0
    loop: start=0, step=1, limit=6
    $region2: #{tpu_custom_call.1} parent=1 // loop_pre_header
      _
    $region3: #{tpu_custom_call.1} parent=1 // loop_header
      %s14 = sphi 0, %s18
      %p15 = scmp.ge.s32.totalorder %s14, 6
      %s21 = sphi 0, %s33
      %s22 = sphi 0, %s29
      %s23 = sphi 0, %s21
      %s24 = sphi 0, %s22
      %s25 = sphi 0, %s23
      %s26 = sphi 0, %s24
      %s38 = sphi 0, %s40
      %s41 = sphi 0, %s38
      %s42 = sphi 0, %s41
      %s58 = sphi 0, %s42
      %s70 = sphi 0, %s72
      %s73 = sphi 0, %s70
      %s74 = sphi 0, %s73
      %s90 = sphi 0, %s74
      %s94 = sphi 0, %s94
      %s96 = sphi 0, %s94
      %s97 = sphi 0, %s96
      %s111 = sphi 0, %s97
      %s115 = sphi 0, %s115
      %s117 = sphi 0, %s115
      %s118 = sphi 0, %s117
      %s132 = sphi 0, %s118
      %s136 = sphi 0, %s136
      %s138 = sphi 0, %s136
      %s139 = sphi 0, %s138
      %s153 = sphi 0, %s139
      %s161 = sphi 0, %s163
      %s164 = sphi 0, %s161
      %s165 = sphi 0, %s164
      %s181 = sphi 0, %s165
    $region4: #{tpu_custom_call.1} parent=1 // loop_header_branch
      %17 = sbr.rel (%p15) target = $region8
    $region5: #{tpu_custom_call.1} parent=1 // loop_body
      %s19 = ssub.s32 %s14, 1
      %s20 = ssub.s32 %s14, 2
      %s27 = sadd.s32 1, %s22
      %p28 = scmp.ge.s32.totalorder %s27, 2
      %s29 = scalar_select %p28, 0, %s27
      %s30 = sadd.s32 1, %s21
      %s31 = scalar_select %p28, %s30, %s21
      %p32 = scmp.ge.s32.totalorder %s31, 2
      %s33 = scalar_select %p32, 0, %s31
      %s34 = ssub.s32 %s21, %s33
      %s35 = ssub.s32 %s22, %s29
      %s36 = sor.u32 %s34, %s35
      %p37 = scmp.eq.s32.totalorder %s36, 0
      %s39 = sadd.s32 %s38, 1
      %s40 = scalar_select %p37, %s38, %s39
      %p43 = pneg %p37
      %p44 = scmp.eq.s32.totalorder %s14, 3
      %p45 = por %p43, %p44
      %p46 = scmp.ne.s32.totalorder %s38, %s41
      %p47 = scmp.eq.s32.totalorder %s14, 0
      %p48 = por %p46, %p47
      %p49 = scmp.ne.s32.totalorder %s38, %s41
      %p50 = scmp.eq.s32.totalorder %s19, 3
      %p51 = por %p49, %p50
      %p52 = scmp.ne.s32.totalorder %s41, %s42
      %p53 = scmp.eq.s32.totalorder %s19, 0
      %p54 = por %p52, %p53
      %p55 = scmp.ne.s32.totalorder %s41, %s42
      %p56 = scmp.eq.s32.totalorder %s20, 3
      %p57 = por %p55, %p56
      %p59 = scmp.ne.s32.totalorder %s42, %s58
      %p60 = scmp.eq.s32.totalorder %s20, 0
      %p61 = por %p59, %p60
      %s62 = sadd.s32 %s22, 1
      %s63 = smul.u32 %s62, 8
      %s64 = sadd.s32 %s29, 1
      %s65 = smul.u32 %s64, 8
      %s66 = ssub.s32 %s21, %s33
      %s67 = ssub.s32 %s63, %s65
      %s68 = sor.u32 %s66, %s67
      %p69 = scmp.eq.s32.totalorder %s68, 0
      %s71 = sadd.s32 %s70, 1
      %s72 = scalar_select %p69, %s70, %s71
      %p75 = pneg %p69
      %p76 = scmp.eq.s32.totalorder %s14, 3
      %p77 = por %p75, %p76
      %p78 = scmp.ne.s32.totalorder %s70, %s73
      %p79 = scmp.eq.s32.totalorder %s14, 0
      %p80 = por %p78, %p79
      %p81 = scmp.ne.s32.totalorder %s70, %s73
      %p82 = scmp.eq.s32.totalorder %s19, 3
      %p83 = por %p81, %p82
      %p84 = scmp.ne.s32.totalorder %s73, %s74
      %p85 = scmp.eq.s32.totalorder %s19, 0
      %p86 = por %p84, %p85
      %p87 = scmp.ne.s32.totalorder %s73, %s74
      %p88 = scmp.eq.s32.totalorder %s20, 3
      %p89 = por %p87, %p88
      %p91 = scmp.ne.s32.totalorder %s74, %s90
      %p92 = scmp.eq.s32.totalorder %s20, 0
      %p93 = por %p91, %p92
      %s95 = sadd.s32 %s94, 1
      %p98 = scmp.eq.s32.totalorder %s14, 3
      %p99 = scmp.ne.s32.totalorder %s94, %s96
      %p100 = scmp.eq.s32.totalorder %s14, 0
      %p101 = por %p99, %p100
      %p102 = scmp.ne.s32.totalorder %s94, %s96
      %p103 = scmp.eq.s32.totalorder %s19, 3
      %p104 = por %p102, %p103
      %p105 = scmp.ne.s32.totalorder %s96, %s97
      %p106 = scmp.eq.s32.totalorder %s19, 0
      %p107 = por %p105, %p106
      %p108 = scmp.ne.s32.totalorder %s96, %s97
      %p109 = scmp.eq.s32.totalorder %s20, 3
      %p110 = por %p108, %p109
      %p112 = scmp.ne.s32.totalorder %s97, %s111
      %p113 = scmp.eq.s32.totalorder %s20, 0
      %p114 = por %p112, %p113
      %s116 = sadd.s32 %s115, 1
      %p119 = scmp.eq.s32.totalorder %s14, 3
      %p120 = scmp.ne.s32.totalorder %s115, %s117
      %p121 = scmp.eq.s32.totalorder %s14, 0
      %p122 = por %p120, %p121
      %p123 = scmp.ne.s32.totalorder %s115, %s117
      %p124 = scmp.eq.s32.totalorder %s19, 3
      %p125 = por %p123, %p124
      %p126 = scmp.ne.s32.totalorder %s117, %s118
      %p127 = scmp.eq.s32.totalorder %s19, 0
      %p128 = por %p126, %p127
      %p129 = scmp.ne.s32.totalorder %s117, %s118
      %p130 = scmp.eq.s32.totalorder %s20, 3
      %p131 = por %p129, %p130
      %p133 = scmp.ne.s32.totalorder %s118, %s132
      %p134 = scmp.eq.s32.totalorder %s20, 0
      %p135 = por %p133, %p134
      %s137 = sadd.s32 %s136, 1
      %p140 = scmp.eq.s32.totalorder %s14, 3
      %p141 = scmp.ne.s32.totalorder %s136, %s138
      %p142 = scmp.eq.s32.totalorder %s14, 0
      %p143 = por %p141, %p142
      %p144 = scmp.ne.s32.totalorder %s136, %s138
      %p145 = scmp.eq.s32.totalorder %s19, 3
      %p146 = por %p144, %p145
      %p147 = scmp.ne.s32.totalorder %s138, %s139
      %p148 = scmp.eq.s32.totalorder %s19, 0
      %p149 = por %p147, %p148
      %p150 = scmp.ne.s32.totalorder %s138, %s139
      %p151 = scmp.eq.s32.totalorder %s20, 3
      %p152 = por %p150, %p151
      %p154 = scmp.ne.s32.totalorder %s139, %s153
      %p155 = scmp.eq.s32.totalorder %s20, 0
      %p156 = por %p154, %p155
      %s157 = ssub.s32 %s21, %s33
      %s158 = ssub.s32 %s22, %s29
      %s159 = sor.u32 %s157, %s158
      %p160 = scmp.eq.s32.totalorder %s159, 0
      %s162 = sadd.s32 %s161, 1
      %s163 = scalar_select %p160, %s161, %s162
      %p166 = pneg %p160
      %p167 = scmp.eq.s32.totalorder %s14, 3
      %p168 = por %p166, %p167
      %p169 = scmp.ne.s32.totalorder %s161, %s164
      %p170 = scmp.eq.s32.totalorder %s14, 0
      %p171 = por %p169, %p170
      %p172 = scmp.ne.s32.totalorder %s161, %s164
      %p173 = scmp.eq.s32.totalorder %s19, 3
      %p174 = por %p172, %p173
      %p175 = scmp.ne.s32.totalorder %s164, %s165
      %p176 = scmp.eq.s32.totalorder %s19, 0
      %p177 = por %p175, %p176
      %p178 = scmp.ne.s32.totalorder %s164, %s165
      %p179 = scmp.eq.s32.totalorder %s20, 3
      %p180 = por %p178, %p179
      %p182 = scmp.ne.s32.totalorder %s165, %s181
      %p183 = scmp.eq.s32.totalorder %s20, 0
      %p184 = por %p182, %p183
      %p185 = scmp.le.s32.totalorder 1, %s14
      %p186 = scmp.lt.s32.totalorder %s14, 5
      %p187 = pnand %p185, %p186
      %p188 = pneg %p187
      // Predicated region
      $region9: #{tpu_custom_call.1} parent=5 // pred_check
        _
      $region10: #{tpu_custom_call.1} parent=5 // pred_check_branch
        %190 = sbr.rel (%p187) target = $region12
      $region11: #{tpu_custom_call.1} parent=5 // pred_region
        %s191 = ssub.s32 %s14, 1
        // Predicated region
        $region13: #{tpu_custom_call.1} parent=11 // pred_check
          %p192 = pneg %p107
        $region14: #{tpu_custom_call.1} parent=11 // pred_check_branch
          %194 = sbr.rel (%p192) target = $region16
        $region15: #{tpu_custom_call.1} parent=11 // pred_region
          _
        $region16: #{tpu_custom_call.1} parent=11 // pred_fallthru
          _
        // Predicated region
        $region17: #{tpu_custom_call.1} parent=11 // pred_check
          %p195 = pneg %p128
        $region18: #{tpu_custom_call.1} parent=11 // pred_check_branch
          %197 = sbr.rel (%p195) target = $region20
        $region19: #{tpu_custom_call.1} parent=11 // pred_region
          _
        $region20: #{tpu_custom_call.1} parent=11 // pred_fallthru
          _
        // Predicated region
        $region21: #{tpu_custom_call.1} parent=11 // pred_check
          %p198 = pneg %p149
        $region22: #{tpu_custom_call.1} parent=11 // pred_check_branch
          %200 = sbr.rel (%p198) target = $region24
        $region23: #{tpu_custom_call.1} parent=11 // pred_region
          _
        $region24: #{tpu_custom_call.1} parent=11 // pred_fallthru
          _
      $region12: #{tpu_custom_call.1} parent=5 // pred_fallthru
        _
      %p201 = scmp.lt.s32.totalorder %s14, 4
      // Predicated region
      $region25: #{tpu_custom_call.1} parent=5 // pred_check
        %p202 = pneg %p201
      $region26: #{tpu_custom_call.1} parent=5 // pred_check_branch
        %204 = sbr.rel (%p202) target = $region28
      $region27: #{tpu_custom_call.1} parent=5 // pred_region
        // Predicated region
        $region29: #{tpu_custom_call.1} parent=27 // pred_check
          %p205 = pneg %p48
        $region30: #{tpu_custom_call.1} parent=27 // pred_check_branch
          %207 = sbr.rel (%p205) target = $region32
        $region31: #{tpu_custom_call.1} parent=27 // pred_region
          %s208 = smul.u32 16, %s22
          %s209 = ssub.s32 34, %s208
          %p210 = scmp.lt.s32.totalorder %s209, 16
          %s211 = scalar_select %p210, %s209, 16
          %s212 = smul.u32 8, %s211
          %s213 = smul.u32 %s212, 5
          %p214 = scmp.lt.s32.totalorder %s21, 1
          %s215 = scalar_select %p214, %s21, 1
          %p216 = scmp.lt.s32.totalorder %s208, 33
          %s217 = scalar_select %p216, %s208, 33
          %s218 = smul.addr %s217, 5
          %s219 = smul.addr %s215, 170
          %s220 = sadd.s32 %s218, %s219
          %s221 = smul.addr %s220, 8
          %s222 = scalar_lea.vmem %s0, %s221
          %s223 = smul.u32 16, %s22
          %s224 = ssub.s32 34, %s223
          %p225 = scmp.lt.s32.totalorder %s224, 16
          %s226 = scalar_select %p225, %s224, 16
          %s227 = smul.u32 8, %s226
          %s228 = smul.u32 %s227, 5
        $region32: #{tpu_custom_call.1} parent=27 // pred_fallthru
          _
        // Predicated region
        $region33: #{tpu_custom_call.1} parent=27 // pred_check
          %p229 = pneg %p80
        $region34: #{tpu_custom_call.1} parent=27 // pred_check_branch
          %231 = sbr.rel (%p229) target = $region36
        $region35: #{tpu_custom_call.1} parent=27 // pred_region
          %s232 = sadd.s32 %s22, 1
          %s233 = smul.u32 %s232, 8
          %s234 = smul.u32 2, %s233
          %p235 = scmp.lt.s32.totalorder %s21, 1
          %s236 = scalar_select %p235, %s21, 1
          %p237 = scmp.lt.s32.totalorder %s234, 33
          %s238 = scalar_select %p237, %s234, 33
          %s239 = smul.addr %s238, 5
          %s240 = smul.addr %s236, 170
          %s241 = sadd.s32 %s239, %s240
          %s242 = smul.addr %s241, 8
          %s243 = scalar_lea.vmem %s1, %s242
          %s244 = sadd.s32 %s22, 1
          %s245 = smul.u32 %s244, 8
          %s246 = smul.u32 2, %s245
        $region36: #{tpu_custom_call.1} parent=27 // pred_fallthru
          _
      $region28: #{tpu_custom_call.1} parent=5 // pred_fallthru
        _
      %p247 = scmp.le.s32.totalorder 1, %s14
      %p248 = scmp.lt.s32.totalorder %s14, 5
      %p249 = pnand %p247, %p248
      %p250 = pneg %p249
      // Predicated region
      $region37: #{tpu_custom_call.1} parent=5 // pred_check
        _
      $region38: #{tpu_custom_call.1} parent=5 // pred_check_branch
        %252 = sbr.rel (%p249) target = $region40
      $region39: #{tpu_custom_call.1} parent=5 // pred_region
        %s253 = ssub.s32 %s14, 1
        %s254 = smul.u32 16, %s24
        %s255 = ssub.s32 34, %s254
        %p256 = scmp.lt.s32.totalorder %s255, 16
        %s257 = scalar_select %p256, %s255, 16
        %s258 = smul.u32 8, %s257
        %s259 = smul.u32 %s258, 5
        %p260 = scmp.lt.s32.totalorder %s23, 1
        %s261 = scalar_select %p260, %s23, 1
        %p262 = scmp.lt.s32.totalorder %s254, 33
        %s263 = scalar_select %p262, %s254, 33
        %s264 = smul.addr %s263, 5
        %s265 = smul.addr %s261, 170
        %s266 = sadd.s32 %s264, %s265
        %s267 = smul.addr %s266, 8
        %s268 = scalar_lea.vmem %s0, %s267
        %p269 = pneg %p54
        %p270 = pneg %p51
        %s271 = sadd.s32 %s24, 1
        %s272 = smul.u32 %s271, 8
        %s273 = smul.u32 2, %s272
        %p274 = scmp.lt.s32.totalorder %s23, 1
        %s275 = scalar_select %p274, %s23, 1
        %p276 = scmp.lt.s32.totalorder %s273, 33
        %s277 = scalar_select %p276, %s273, 33
        %s278 = smul.addr %s277, 5
        %s279 = smul.addr %s275, 170
        %s280 = sadd.s32 %s278, %s279
        %s281 = smul.addr %s280, 8
        %s282 = scalar_lea.vmem %s1, %s281
        %p283 = pneg %p86
        %p284 = pneg %p83
        %p285 = pneg %p107
        %p286 = pneg %p104
        %p287 = pneg %p128
        %p288 = pneg %p125
        %p289 = pneg %p149
        %p290 = pneg %p146
        %p291 = pneg %p177
        %p292 = pneg %p174
        %s293 = sand.u32 %s164, 1
        %s294 = scalar_lea.sflag [#allocation3], %s293
        %s295 = sand.u32 %s164, 1
        %s296 = smul.addr %s295, 32
        %s297 = scalar_lea.vmem [#allocation2], %s296
        %s298 = smul.u32 16, %s24
        %s299 = ssub.s32 34, %s298
        %p300 = scmp.lt.s32.totalorder %s299, 16
        %s301 = scalar_select %p300, %s299, 16
        %s302 = smul.u32 8, %s301
        %s303 = smul.u32 %s302, 5
        %p304 = scmp.lt.s32.totalorder %s23, 1
        %s305 = scalar_select %p304, %s23, 1
        %p306 = scmp.lt.s32.totalorder %s298, 33
        %s307 = scalar_select %p306, %s298, 33
        %s308 = smul.addr %s307, 5
        %s309 = smul.addr %s305, 170
        %s310 = sadd.s32 %s308, %s309
        %s311 = smul.addr %s310, 8
        %s312 = scalar_lea.vmem %s0, %s311
        %s313 = smul.u32 16, %s24
        %s314 = ssub.s32 34, %s313
        %p315 = scmp.lt.s32.totalorder %s314, 16
        %s316 = scalar_select %p315, %s314, 16
        %s317 = smul.u32 8, %s316
        %s318 = smul.u32 %s317, 5
        %s319 = sadd.s32 %s24, 1
        %s320 = smul.u32 %s319, 8
        %s321 = smul.u32 2, %s320
        %p322 = scmp.lt.s32.totalorder %s23, 1
        %s323 = scalar_select %p322, %s23, 1
        %p324 = scmp.lt.s32.totalorder %s321, 33
        %s325 = scalar_select %p324, %s321, 33
        %s326 = smul.addr %s325, 5
        %s327 = smul.addr %s323, 170
        %s328 = sadd.s32 %s326, %s327
        %s329 = smul.addr %s328, 8
        %s330 = scalar_lea.vmem %s1, %s329
        %s331 = sadd.s32 %s24, 1
        %s332 = smul.u32 %s331, 8
        %s333 = smul.u32 2, %s332
        %s334 = smul.u32 4, %s24
        %v335 = vld [vmem:[%s312] sm:$0xff]
        %v336 = vld [vmem:[%s312 + $0x8] sm:$0xff]
        %v337 = vld [vmem:[%s312 + $0x10] sm:$0xff]
        %v338 = vld [vmem:[%s312 + $0x18] sm:$0xff]
        %v339 = vld [vmem:[%s312 + $0x20] sm:$0x3]
        %v340 = vld [vmem:[%s312 + $0x28] sm:$0xff]
        %v341 = vld [vmem:[%s312 + $0x30] sm:$0xff]
        %v342 = vld [vmem:[%s312 + $0x38] sm:$0xff]
        %v343 = vld [vmem:[%s312 + $0x40] sm:$0xff]
        %v344 = vld [vmem:[%s312 + $0x48] sm:$0x3]
        %v345 = vld [vmem:[%s312 + $0x50] sm:$0xff]
        %v346 = vld [vmem:[%s312 + $0x58] sm:$0xff]
        %v347 = vld [vmem:[%s312 + $0x60] sm:$0xff]
        %v348 = vld [vmem:[%s312 + $0x68] sm:$0xff]
        %v349 = vld [vmem:[%s312 + $0x70] sm:$0x3]
        %v350 = vld [vmem:[%s312 + $0x78] sm:$0xff]
        %v351 = vld [vmem:[%s312 + $0x80] sm:$0xff]
        %v352 = vld [vmem:[%s312 + $0x88] sm:$0xff]
        %v353 = vld [vmem:[%s312 + $0x90] sm:$0xff]
        %v354 = vld [vmem:[%s312 + $0x98] sm:$0x3]
        %v355 = vld [vmem:[%s312 + $0xa0] sm:$0xff]
        %v356 = vld [vmem:[%s312 + $0xa8] sm:$0xff]
        %v357 = vld [vmem:[%s312 + $0xb0] sm:$0xff]
        %v358 = vld [vmem:[%s312 + $0xb8] sm:$0xff]
        %v359 = vld [vmem:[%s312 + $0xc0] sm:$0x3]
        %v360 = vld [vmem:[%s312 + $0xc8] sm:$0xff]
        %v361 = vld [vmem:[%s312 + $0xd0] sm:$0xff]
        %v362 = vld [vmem:[%s312 + $0xd8] sm:$0xff]
        %v363 = vld [vmem:[%s312 + $0xe0] sm:$0xff]
        %v364 = vld [vmem:[%s312 + $0xe8] sm:$0x3]
        %v365 = vld [vmem:[%s312 + $0xf0] sm:$0xff]
        %v366 = vld [vmem:[%s312 + $0xf8] sm:$0xff]
        %v367 = vld [vmem:[%s312 + $0x100] sm:$0xff]
        %v368 = vld [vmem:[%s312 + $0x108] sm:$0xff]
        %v369 = vld [vmem:[%s312 + $0x110] sm:$0x3]
        %v370 = vld [vmem:[%s312 + $0x118] sm:$0xff]
        %v371 = vld [vmem:[%s312 + $0x120] sm:$0xff]
        %v372 = vld [vmem:[%s312 + $0x128] sm:$0xff]
        %v373 = vld [vmem:[%s312 + $0x130] sm:$0xff]
        %v374 = vld [vmem:[%s312 + $0x138] sm:$0x3]
        %v375 = vld [vmem:[%s312 + $0x140] sm:$0xff]
        %v376 = vld [vmem:[%s312 + $0x148] sm:$0xff]
        %v377 = vld [vmem:[%s312 + $0x150] sm:$0xff]
        %v378 = vld [vmem:[%s312 + $0x158] sm:$0xff]
        %v379 = vld [vmem:[%s312 + $0x160] sm:$0x3]
        %v380 = vld [vmem:[%s312 + $0x168] sm:$0xff]
        %v381 = vld [vmem:[%s312 + $0x170] sm:$0xff]
        %v382 = vld [vmem:[%s312 + $0x178] sm:$0xff]
        %v383 = vld [vmem:[%s312 + $0x180] sm:$0xff]
        %v384 = vld [vmem:[%s312 + $0x188] sm:$0x3]
        %v385 = vld [vmem:[%s312 + $0x190] sm:$0xff]
        %v386 = vld [vmem:[%s312 + $0x198] sm:$0xff]
        %v387 = vld [vmem:[%s312 + $0x1a0] sm:$0xff]
        %v388 = vld [vmem:[%s312 + $0x1a8] sm:$0xff]
        %v389 = vld [vmem:[%s312 + $0x1b0] sm:$0x3]
        %v390 = vld [vmem:[%s312 + $0x1b8] sm:$0xff]
        %v391 = vld [vmem:[%s312 + $0x1c0] sm:$0xff]
        %v392 = vld [vmem:[%s312 + $0x1c8] sm:$0xff]
        %v393 = vld [vmem:[%s312 + $0x1d0] sm:$0xff]
        %v394 = vld [vmem:[%s312 + $0x1d8] sm:$0x3]
        %v395 = vld [vmem:[%s312 + $0x1e0] sm:$0xff]
        %v396 = vld [vmem:[%s312 + $0x1e8] sm:$0xff]
        %v397 = vld [vmem:[%s312 + $0x1f0] sm:$0xff]
        %v398 = vld [vmem:[%s312 + $0x1f8] sm:$0xff]
        %v399 = vld [vmem:[%s312 + $0x200] sm:$0x3]
        %v400 = vld [vmem:[%s312 + $0x208] sm:$0xff]
        %v401 = vld [vmem:[%s312 + $0x210] sm:$0xff]
        %v402 = vld [vmem:[%s312 + $0x218] sm:$0xff]
        %v403 = vld [vmem:[%s312 + $0x220] sm:$0xff]
        %v404 = vld [vmem:[%s312 + $0x228] sm:$0x3]
        %v405 = vld [vmem:[%s312 + $0x230] sm:$0xff]
        %v406 = vld [vmem:[%s312 + $0x238] sm:$0xff]
        %v407 = vld [vmem:[%s312 + $0x240] sm:$0xff]
        %v408 = vld [vmem:[%s312 + $0x248] sm:$0xff]
        %v409 = vld [vmem:[%s312 + $0x250] sm:$0x3]
        %v410 = vld [vmem:[%s312 + $0x258] sm:$0xff]
        %v411 = vld [vmem:[%s312 + $0x260] sm:$0xff]
        %v412 = vld [vmem:[%s312 + $0x268] sm:$0xff]
        %v413 = vld [vmem:[%s312 + $0x270] sm:$0xff]
        %v414 = vld [vmem:[%s312 + $0x278] sm:$0x3]
        %v415 = vld [vmem:[%s330] sm:$0xff]
        %v416 = vld [vmem:[%s330 + $0x8] sm:$0xff]
        %v417 = vld [vmem:[%s330 + $0x10] sm:$0xff]
        %v418 = vld [vmem:[%s330 + $0x18] sm:$0xff]
        %v419 = vld [vmem:[%s330 + $0x20] sm:$0x3]
        %v420 = vld [vmem:[%s330 + $0x28] sm:$0xff]
        %v421 = vld [vmem:[%s330 + $0x30] sm:$0xff]
        %v422 = vld [vmem:[%s330 + $0x38] sm:$0xff]
        %v423 = vld [vmem:[%s330 + $0x40] sm:$0xff]
        %v424 = vld [vmem:[%s330 + $0x48] sm:$0x3]
        %vm505 = vcmask 1046528
        %v506 = vrot.slane %v335, 1
        %v507 = vrot.slane %v336, 1
        %v508 = vsel %vm505, %v506, %v507
        %v509 = vrot.slane %v337, 1
        %v510 = vsel %vm505, %v507, %v509
        %v511 = vrot.slane %v338, 1
        %v512 = vsel %vm505, %v509, %v511
        %v513 = vrot.slane %v339, 1
        %v514 = vsel %vm505, %v511, %v513
        %v515 = vrot.slane %v340, 1
        %v516 = vrot.slane %v341, 1
        %v517 = vsel %vm505, %v515, %v516
        %v518 = vrot.slane %v342, 1
        %v519 = vsel %vm505, %v516, %v518
        %v520 = vrot.slane %v343, 1
        %v521 = vsel %vm505, %v518, %v520
        %v522 = vrot.slane %v344, 1
        %v523 = vsel %vm505, %v520, %v522
        %v524 = vrot.slane %v345, 1
        %v525 = vrot.slane %v346, 1
        %v526 = vsel %vm505, %v524, %v525
        %v527 = vrot.slane %v347, 1
        %v528 = vsel %vm505, %v525, %v527
        %v529 = vrot.slane %v348, 1
        %v530 = vsel %vm505, %v527, %v529
        %v531 = vrot.slane %v349, 1
        %v532 = vsel %vm505, %v529, %v531
        %v533 = vrot.slane %v350, 1
        %v534 = vrot.slane %v351, 1
        %v535 = vsel %vm505, %v533, %v534
        %v536 = vrot.slane %v352, 1
        %v537 = vsel %vm505, %v534, %v536
        %v538 = vrot.slane %v353, 1
        %v539 = vsel %vm505, %v536, %v538
        %v540 = vrot.slane %v354, 1
        %v541 = vsel %vm505, %v538, %v540
        %v542 = vrot.slane %v355, 1
        %v543 = vrot.slane %v356, 1
        %v544 = vsel %vm505, %v542, %v543
        %v545 = vrot.slane %v357, 1
        %v546 = vsel %vm505, %v543, %v545
        %v547 = vrot.slane %v358, 1
        %v548 = vsel %vm505, %v545, %v547
        %v549 = vrot.slane %v359, 1
        %v550 = vsel %vm505, %v547, %v549
        %v551 = vrot.slane %v360, 1
        %v552 = vrot.slane %v361, 1
        %v553 = vsel %vm505, %v551, %v552
        %v554 = vrot.slane %v362, 1
        %v555 = vsel %vm505, %v552, %v554
        %v556 = vrot.slane %v363, 1
        %v557 = vsel %vm505, %v554, %v556
        %v558 = vrot.slane %v364, 1
        %v559 = vsel %vm505, %v556, %v558
        %v560 = vrot.slane %v365, 1
        %v561 = vrot.slane %v366, 1
        %v562 = vsel %vm505, %v560, %v561
        %v563 = vrot.slane %v367, 1
        %v564 = vsel %vm505, %v561, %v563
        %v565 = vrot.slane %v368, 1
        %v566 = vsel %vm505, %v563, %v565
        %v567 = vrot.slane %v369, 1
        %v568 = vsel %vm505, %v565, %v567
        %v569 = vrot.slane %v370, 1
        %v570 = vrot.slane %v371, 1
        %v571 = vsel %vm505, %v569, %v570
        %v572 = vrot.slane %v372, 1
        %v573 = vsel %vm505, %v570, %v572
        %v574 = vrot.slane %v373, 1
        %v575 = vsel %vm505, %v572, %v574
        %v576 = vrot.slane %v374, 1
        %v577 = vsel %vm505, %v574, %v576
        %v578 = vrot.slane %v375, 1
        %v579 = vrot.slane %v376, 1
        %v580 = vsel %vm505, %v578, %v579
        %v581 = vrot.slane %v377, 1
        %v582 = vsel %vm505, %v579, %v581
        %v583 = vrot.slane %v378, 1
        %v584 = vsel %vm505, %v581, %v583
        %v585 = vrot.slane %v379, 1
        %v586 = vsel %vm505, %v583, %v585
        %v587 = vrot.slane %v380, 1
        %v588 = vrot.slane %v381, 1
        %v589 = vsel %vm505, %v587, %v588
        %v590 = vrot.slane %v382, 1
        %v591 = vsel %vm505, %v588, %v590
        %v592 = vrot.slane %v383, 1
        %v593 = vsel %vm505, %v590, %v592
        %v594 = vrot.slane %v384, 1
        %v595 = vsel %vm505, %v592, %v594
        %v596 = vrot.slane %v385, 1
        %v597 = vrot.slane %v386, 1
        %v598 = vsel %vm505, %v596, %v597
        %v599 = vrot.slane %v387, 1
        %v600 = vsel %vm505, %v597, %v599
        %v601 = vrot.slane %v388, 1
        %v602 = vsel %vm505, %v599, %v601
        %v603 = vrot.slane %v389, 1
        %v604 = vsel %vm505, %v601, %v603
        %v605 = vrot.slane %v390, 1
        %v606 = vrot.slane %v391, 1
        %v607 = vsel %vm505, %v605, %v606
        %v608 = vrot.slane %v392, 1
        %v609 = vsel %vm505, %v606, %v608
        %v610 = vrot.slane %v393, 1
        %v611 = vsel %vm505, %v608, %v610
        %v612 = vrot.slane %v394, 1
        %v613 = vsel %vm505, %v610, %v612
        %v614 = vrot.slane %v395, 1
        %v615 = vrot.slane %v396, 1
        %v616 = vsel %vm505, %v614, %v615
        %v617 = vrot.slane %v397, 1
        %v618 = vsel %vm505, %v615, %v617
        %v619 = vrot.slane %v398, 1
        %v620 = vsel %vm505, %v617, %v619
        %v621 = vrot.slane %v399, 1
        %v622 = vsel %vm505, %v619, %v621
        %v623 = vrot.slane %v400, 1
        %v624 = vrot.slane %v401, 1
        %v625 = vsel %vm505, %v623, %v624
        %v626 = vrot.slane %v402, 1
        %v627 = vsel %vm505, %v624, %v626
        %v628 = vrot.slane %v403, 1
        %v629 = vsel %vm505, %v626, %v628
        %v630 = vrot.slane %v404, 1
        %v631 = vsel %vm505, %v628, %v630
        %v632 = vrot.slane %v405, 1
        %v633 = vrot.slane %v406, 1
        %v634 = vsel %vm505, %v632, %v633
        %v635 = vrot.slane %v407, 1
        %v636 = vsel %vm505, %v633, %v635
        %v637 = vrot.slane %v408, 1
        %v638 = vsel %vm505, %v635, %v637
        %v639 = vrot.slane %v409, 1
        %v640 = vsel %vm505, %v637, %v639
        %v641 = vrot.slane %v410, 1
        %v642 = vrot.slane %v411, 1
        %v643 = vsel %vm505, %v641, %v642
        %v644 = vrot.slane %v412, 1
        %v645 = vsel %vm505, %v642, %v644
        %v646 = vrot.slane %v413, 1
        %v647 = vsel %vm505, %v644, %v646
        %v648 = vrot.slane %v414, 1
        %v649 = vsel %vm505, %v646, %v648
        %650 = vrot.lane.b32.xlu0 %v508, 4
        %v651 = vpop.permute.xlu0 %650
        %652 = vrot.lane.b32.xlu0 %v510, 4
        %v653 = vpop.permute.xlu0 %652
        %654 = vrot.lane.b32.xlu0 %v512, 4
        %v655 = vpop.permute.xlu0 %654
        %656 = vrot.lane.b32.xlu0 %v514, 4
        %v657 = vpop.permute.xlu0 %656
        %658 = vrot.lane.b32.xlu0 %v517, 4
        %v659 = vpop.permute.xlu0 %658
        %660 = vrot.lane.b32.xlu0 %v519, 4
        %v661 = vpop.permute.xlu0 %660
        %662 = vrot.lane.b32.xlu0 %v521, 4
        %v663 = vpop.permute.xlu0 %662
        %664 = vrot.lane.b32.xlu0 %v523, 4
        %v665 = vpop.permute.xlu0 %664
        %666 = vrot.lane.b32.xlu0 %v526, 4
        %v667 = vpop.permute.xlu0 %666
        %668 = vrot.lane.b32.xlu0 %v528, 4
        %v669 = vpop.permute.xlu0 %668
        %670 = vrot.lane.b32.xlu0 %v530, 4
        %v671 = vpop.permute.xlu0 %670
        %672 = vrot.lane.b32.xlu0 %v532, 4
        %v673 = vpop.permute.xlu0 %672
        %674 = vrot.lane.b32.xlu0 %v535, 4
        %v675 = vpop.permute.xlu0 %674
        %676 = vrot.lane.b32.xlu0 %v537, 4
        %v677 = vpop.permute.xlu0 %676
        %678 = vrot.lane.b32.xlu0 %v539, 4
        %v679 = vpop.permute.xlu0 %678
        %680 = vrot.lane.b32.xlu0 %v541, 4
        %v681 = vpop.permute.xlu0 %680
        %682 = vrot.lane.b32.xlu0 %v544, 4
        %v683 = vpop.permute.xlu0 %682
        %684 = vrot.lane.b32.xlu0 %v546, 4
        %v685 = vpop.permute.xlu0 %684
        %686 = vrot.lane.b32.xlu0 %v548, 4
        %v687 = vpop.permute.xlu0 %686
        %688 = vrot.lane.b32.xlu0 %v550, 4
        %v689 = vpop.permute.xlu0 %688
        %690 = vrot.lane.b32.xlu0 %v553, 4
        %v691 = vpop.permute.xlu0 %690
        %692 = vrot.lane.b32.xlu0 %v555, 4
        %v693 = vpop.permute.xlu0 %692
        %694 = vrot.lane.b32.xlu0 %v557, 4
        %v695 = vpop.permute.xlu0 %694
        %696 = vrot.lane.b32.xlu0 %v559, 4
        %v697 = vpop.permute.xlu0 %696
        %698 = vrot.lane.b32.xlu0 %v562, 4
        %v699 = vpop.permute.xlu0 %698
        %700 = vrot.lane.b32.xlu0 %v564, 4
        %v701 = vpop.permute.xlu0 %700
        %702 = vrot.lane.b32.xlu0 %v566, 4
        %v703 = vpop.permute.xlu0 %702
        %704 = vrot.lane.b32.xlu0 %v568, 4
        %v705 = vpop.permute.xlu0 %704
        %706 = vrot.lane.b32.xlu0 %v571, 4
        %v707 = vpop.permute.xlu0 %706
        %708 = vrot.lane.b32.xlu0 %v573, 4
        %v709 = vpop.permute.xlu0 %708
        %710 = vrot.lane.b32.xlu0 %v575, 4
        %v711 = vpop.permute.xlu0 %710
        %712 = vrot.lane.b32.xlu0 %v577, 4
        %v713 = vpop.permute.xlu0 %712
        %714 = vrot.lane.b32.xlu0 %v580, 4
        %v715 = vpop.permute.xlu0 %714
        %716 = vrot.lane.b32.xlu0 %v582, 4
        %v717 = vpop.permute.xlu0 %716
        %718 = vrot.lane.b32.xlu0 %v584, 4
        %v719 = vpop.permute.xlu0 %718
        %720 = vrot.lane.b32.xlu0 %v586, 4
        %v721 = vpop.permute.xlu0 %720
        %722 = vrot.lane.b32.xlu0 %v589, 4
        %v723 = vpop.permute.xlu0 %722
        %724 = vrot.lane.b32.xlu0 %v591, 4
        %v725 = vpop.permute.xlu0 %724
        %726 = vrot.lane.b32.xlu0 %v593, 4
        %v727 = vpop.permute.xlu0 %726
        %728 = vrot.lane.b32.xlu0 %v595, 4
        %v729 = vpop.permute.xlu0 %728
        %730 = vrot.lane.b32.xlu0 %v598, 4
        %v731 = vpop.permute.xlu0 %730
        %732 = vrot.lane.b32.xlu0 %v600, 4
        %v733 = vpop.permute.xlu0 %732
        %734 = vrot.lane.b32.xlu0 %v602, 4
        %v735 = vpop.permute.xlu0 %734
        %736 = vrot.lane.b32.xlu0 %v604, 4
        %v737 = vpop.permute.xlu0 %736
        %738 = vrot.lane.b32.xlu0 %v607, 4
        %v739 = vpop.permute.xlu0 %738
        %740 = vrot.lane.b32.xlu0 %v609, 4
        %v741 = vpop.permute.xlu0 %740
        %742 = vrot.lane.b32.xlu0 %v611, 4
        %v743 = vpop.permute.xlu0 %742
        %744 = vrot.lane.b32.xlu0 %v613, 4
        %v745 = vpop.permute.xlu0 %744
        %746 = vrot.lane.b32.xlu0 %v616, 4
        %v747 = vpop.permute.xlu0 %746
        %748 = vrot.lane.b32.xlu0 %v618, 4
        %v749 = vpop.permute.xlu0 %748
        %750 = vrot.lane.b32.xlu0 %v620, 4
        %v751 = vpop.permute.xlu0 %750
        %752 = vrot.lane.b32.xlu0 %v622, 4
        %v753 = vpop.permute.xlu0 %752
        %754 = vrot.lane.b32.xlu0 %v625, 4
        %v755 = vpop.permute.xlu0 %754
        %756 = vrot.lane.b32.xlu0 %v627, 4
        %v757 = vpop.permute.xlu0 %756
        %758 = vrot.lane.b32.xlu0 %v629, 4
        %v759 = vpop.permute.xlu0 %758
        %760 = vrot.lane.b32.xlu0 %v631, 4
        %v761 = vpop.permute.xlu0 %760
        %762 = vrot.lane.b32.xlu0 %v634, 4
        %v763 = vpop.permute.xlu0 %762
        %764 = vrot.lane.b32.xlu0 %v636, 4
        %v765 = vpop.permute.xlu0 %764
        %766 = vrot.lane.b32.xlu0 %v638, 4
        %v767 = vpop.permute.xlu0 %766
        %768 = vrot.lane.b32.xlu0 %v640, 4
        %v769 = vpop.permute.xlu0 %768
        %770 = vrot.lane.b32.xlu0 %v643, 4
        %v771 = vpop.permute.xlu0 %770
        %772 = vrot.lane.b32.xlu0 %v645, 4
        %v773 = vpop.permute.xlu0 %772
        %774 = vrot.lane.b32.xlu0 %v647, 4
        %v775 = vpop.permute.xlu0 %774
        %776 = vrot.lane.b32.xlu0 %v649, 4
        %v777 = vpop.permute.xlu0 %776
        %vm842 = vcmask 1045504
        %v843 = vrot.slane %v335, 2
        %v844 = vrot.slane %v336, 2
        %v845 = vsel %vm842, %v843, %v844
        %v846 = vrot.slane %v337, 2
        %v847 = vsel %vm842, %v844, %v846
        %v848 = vrot.slane %v338, 2
        %v849 = vsel %vm842, %v846, %v848
        %v850 = vrot.slane %v339, 2
        %v851 = vsel %vm842, %v848, %v850
        %v852 = vrot.slane %v340, 2
        %v853 = vrot.slane %v341, 2
        %v854 = vsel %vm842, %v852, %v853
        %v855 = vrot.slane %v342, 2
        %v856 = vsel %vm842, %v853, %v855
        %v857 = vrot.slane %v343, 2
        %v858 = vsel %vm842, %v855, %v857
        %v859 = vrot.slane %v344, 2
        %v860 = vsel %vm842, %v857, %v859
        %v861 = vrot.slane %v345, 2
        %v862 = vrot.slane %v346, 2
        %v863 = vsel %vm842, %v861, %v862
        %v864 = vrot.slane %v347, 2
        %v865 = vsel %vm842, %v862, %v864
        %v866 = vrot.slane %v348, 2
        %v867 = vsel %vm842, %v864, %v866
        %v868 = vrot.slane %v349, 2
        %v869 = vsel %vm842, %v866, %v868
        %v870 = vrot.slane %v350, 2
        %v871 = vrot.slane %v351, 2
        %v872 = vsel %vm842, %v870, %v871
        %v873 = vrot.slane %v352, 2
        %v874 = vsel %vm842, %v871, %v873
        %v875 = vrot.slane %v353, 2
        %v876 = vsel %vm842, %v873, %v875
        %v877 = vrot.slane %v354, 2
        %v878 = vsel %vm842, %v875, %v877
        %v879 = vrot.slane %v355, 2
        %v880 = vrot.slane %v356, 2
        %v881 = vsel %vm842, %v879, %v880
        %v882 = vrot.slane %v357, 2
        %v883 = vsel %vm842, %v880, %v882
        %v884 = vrot.slane %v358, 2
        %v885 = vsel %vm842, %v882, %v884
        %v886 = vrot.slane %v359, 2
        %v887 = vsel %vm842, %v884, %v886
        %v888 = vrot.slane %v360, 2
        %v889 = vrot.slane %v361, 2
        %v890 = vsel %vm842, %v888, %v889
        %v891 = vrot.slane %v362, 2
        %v892 = vsel %vm842, %v889, %v891
        %v893 = vrot.slane %v363, 2
        %v894 = vsel %vm842, %v891, %v893
        %v895 = vrot.slane %v364, 2
        %v896 = vsel %vm842, %v893, %v895
        %v897 = vrot.slane %v365, 2
        %v898 = vrot.slane %v366, 2
        %v899 = vsel %vm842, %v897, %v898
        %v900 = vrot.slane %v367, 2
        %v901 = vsel %vm842, %v898, %v900
        %v902 = vrot.slane %v368, 2
        %v903 = vsel %vm842, %v900, %v902
        %v904 = vrot.slane %v369, 2
        %v905 = vsel %vm842, %v902, %v904
        %v906 = vrot.slane %v370, 2
        %v907 = vrot.slane %v371, 2
        %v908 = vsel %vm842, %v906, %v907
        %v909 = vrot.slane %v372, 2
        %v910 = vsel %vm842, %v907, %v909
        %v911 = vrot.slane %v373, 2
        %v912 = vsel %vm842, %v909, %v911
        %v913 = vrot.slane %v374, 2
        %v914 = vsel %vm842, %v911, %v913
        %v915 = vrot.slane %v375, 2
        %v916 = vrot.slane %v376, 2
        %v917 = vsel %vm842, %v915, %v916
        %v918 = vrot.slane %v377, 2
        %v919 = vsel %vm842, %v916, %v918
        %v920 = vrot.slane %v378, 2
        %v921 = vsel %vm842, %v918, %v920
        %v922 = vrot.slane %v379, 2
        %v923 = vsel %vm842, %v920, %v922
        %v924 = vrot.slane %v380, 2
        %v925 = vrot.slane %v381, 2
        %v926 = vsel %vm842, %v924, %v925
        %v927 = vrot.slane %v382, 2
        %v928 = vsel %vm842, %v925, %v927
        %v929 = vrot.slane %v383, 2
        %v930 = vsel %vm842, %v927, %v929
        %v931 = vrot.slane %v384, 2
        %v932 = vsel %vm842, %v929, %v931
        %v933 = vrot.slane %v385, 2
        %v934 = vrot.slane %v386, 2
        %v935 = vsel %vm842, %v933, %v934
        %v936 = vrot.slane %v387, 2
        %v937 = vsel %vm842, %v934, %v936
        %v938 = vrot.slane %v388, 2
        %v939 = vsel %vm842, %v936, %v938
        %v940 = vrot.slane %v389, 2
        %v941 = vsel %vm842, %v938, %v940
        %v942 = vrot.slane %v390, 2
        %v943 = vrot.slane %v391, 2
        %v944 = vsel %vm842, %v942, %v943
        %v945 = vrot.slane %v392, 2
        %v946 = vsel %vm842, %v943, %v945
        %v947 = vrot.slane %v393, 2
        %v948 = vsel %vm842, %v945, %v947
        %v949 = vrot.slane %v394, 2
        %v950 = vsel %vm842, %v947, %v949
        %v951 = vrot.slane %v395, 2
        %v952 = vrot.slane %v396, 2
        %v953 = vsel %vm842, %v951, %v952
        %v954 = vrot.slane %v397, 2
        %v955 = vsel %vm842, %v952, %v954
        %v956 = vrot.slane %v398, 2
        %v957 = vsel %vm842, %v954, %v956
        %v958 = vrot.slane %v399, 2
        %v959 = vsel %vm842, %v956, %v958
        %v960 = vrot.slane %v400, 2
        %v961 = vrot.slane %v401, 2
        %v962 = vsel %vm842, %v960, %v961
        %v963 = vrot.slane %v402, 2
        %v964 = vsel %vm842, %v961, %v963
        %v965 = vrot.slane %v403, 2
        %v966 = vsel %vm842, %v963, %v965
        %v967 = vrot.slane %v404, 2
        %v968 = vsel %vm842, %v965, %v967
        %v969 = vrot.slane %v405, 2
        %v970 = vrot.slane %v406, 2
        %v971 = vsel %vm842, %v969, %v970
        %v972 = vrot.slane %v407, 2
        %v973 = vsel %vm842, %v970, %v972
        %v974 = vrot.slane %v408, 2
        %v975 = vsel %vm842, %v972, %v974
        %v976 = vrot.slane %v409, 2
        %v977 = vsel %vm842, %v974, %v976
        %v978 = vrot.slane %v410, 2
        %v979 = vrot.slane %v411, 2
        %v980 = vsel %vm842, %v978, %v979
        %v981 = vrot.slane %v412, 2
        %v982 = vsel %vm842, %v979, %v981
        %v983 = vrot.slane %v413, 2
        %v984 = vsel %vm842, %v981, %v983
        %v985 = vrot.slane %v414, 2
        %v986 = vsel %vm842, %v983, %v985
        %987 = vrot.lane.b32.xlu0 %v845, 8
        %v988 = vpop.permute.xlu0 %987
        %989 = vrot.lane.b32.xlu0 %v847, 8
        %v990 = vpop.permute.xlu0 %989
        %991 = vrot.lane.b32.xlu0 %v849, 8
        %v992 = vpop.permute.xlu0 %991
        %993 = vrot.lane.b32.xlu0 %v851, 8
        %v994 = vpop.permute.xlu0 %993
        %995 = vrot.lane.b32.xlu0 %v854, 8
        %v996 = vpop.permute.xlu0 %995
        %997 = vrot.lane.b32.xlu0 %v856, 8
        %v998 = vpop.permute.xlu0 %997
        %999 = vrot.lane.b32.xlu0 %v858, 8
        %v1000 = vpop.permute.xlu0 %999
        %1001 = vrot.lane.b32.xlu0 %v860, 8
        %v1002 = vpop.permute.xlu0 %1001
        %1003 = vrot.lane.b32.xlu0 %v863, 8
        %v1004 = vpop.permute.xlu0 %1003
        %1005 = vrot.lane.b32.xlu0 %v865, 8
        %v1006 = vpop.permute.xlu0 %1005
        %1007 = vrot.lane.b32.xlu0 %v867, 8
        %v1008 = vpop.permute.xlu0 %1007
        %1009 = vrot.lane.b32.xlu0 %v869, 8
        %v1010 = vpop.permute.xlu0 %1009
        %1011 = vrot.lane.b32.xlu0 %v872, 8
        %v1012 = vpop.permute.xlu0 %1011
        %1013 = vrot.lane.b32.xlu0 %v874, 8
        %v1014 = vpop.permute.xlu0 %1013
        %1015 = vrot.lane.b32.xlu0 %v876, 8
        %v1016 = vpop.permute.xlu0 %1015
        %1017 = vrot.lane.b32.xlu0 %v878, 8
        %v1018 = vpop.permute.xlu0 %1017
        %1019 = vrot.lane.b32.xlu0 %v881, 8
        %v1020 = vpop.permute.xlu0 %1019
        %1021 = vrot.lane.b32.xlu0 %v883, 8
        %v1022 = vpop.permute.xlu0 %1021
        %1023 = vrot.lane.b32.xlu0 %v885, 8
        %v1024 = vpop.permute.xlu0 %1023
        %1025 = vrot.lane.b32.xlu0 %v887, 8
        %v1026 = vpop.permute.xlu0 %1025
        %1027 = vrot.lane.b32.xlu0 %v890, 8
        %v1028 = vpop.permute.xlu0 %1027
        %1029 = vrot.lane.b32.xlu0 %v892, 8
        %v1030 = vpop.permute.xlu0 %1029
        %1031 = vrot.lane.b32.xlu0 %v894, 8
        %v1032 = vpop.permute.xlu0 %1031
        %1033 = vrot.lane.b32.xlu0 %v896, 8
        %v1034 = vpop.permute.xlu0 %1033
        %1035 = vrot.lane.b32.xlu0 %v899, 8
        %v1036 = vpop.permute.xlu0 %1035
        %1037 = vrot.lane.b32.xlu0 %v901, 8
        %v1038 = vpop.permute.xlu0 %1037
        %1039 = vrot.lane.b32.xlu0 %v903, 8
        %v1040 = vpop.permute.xlu0 %1039
        %1041 = vrot.lane.b32.xlu0 %v905, 8
        %v1042 = vpop.permute.xlu0 %1041
        %1043 = vrot.lane.b32.xlu0 %v908, 8
        %v1044 = vpop.permute.xlu0 %1043
        %1045 = vrot.lane.b32.xlu0 %v910, 8
        %v1046 = vpop.permute.xlu0 %1045
        %1047 = vrot.lane.b32.xlu0 %v912, 8
        %v1048 = vpop.permute.xlu0 %1047
        %1049 = vrot.lane.b32.xlu0 %v914, 8
        %v1050 = vpop.permute.xlu0 %1049
        %1051 = vrot.lane.b32.xlu0 %v917, 8
        %v1052 = vpop.permute.xlu0 %1051
        %1053 = vrot.lane.b32.xlu0 %v919, 8
        %v1054 = vpop.permute.xlu0 %1053
        %1055 = vrot.lane.b32.xlu0 %v921, 8
        %v1056 = vpop.permute.xlu0 %1055
        %1057 = vrot.lane.b32.xlu0 %v923, 8
        %v1058 = vpop.permute.xlu0 %1057
        %1059 = vrot.lane.b32.xlu0 %v926, 8
        %v1060 = vpop.permute.xlu0 %1059
        %1061 = vrot.lane.b32.xlu0 %v928, 8
        %v1062 = vpop.permute.xlu0 %1061
        %1063 = vrot.lane.b32.xlu0 %v930, 8
        %v1064 = vpop.permute.xlu0 %1063
        %1065 = vrot.lane.b32.xlu0 %v932, 8
        %v1066 = vpop.permute.xlu0 %1065
        %1067 = vrot.lane.b32.xlu0 %v935, 8
        %v1068 = vpop.permute.xlu0 %1067
        %1069 = vrot.lane.b32.xlu0 %v937, 8
        %v1070 = vpop.permute.xlu0 %1069
        %1071 = vrot.lane.b32.xlu0 %v939, 8
        %v1072 = vpop.permute.xlu0 %1071
        %1073 = vrot.lane.b32.xlu0 %v941, 8
        %v1074 = vpop.permute.xlu0 %1073
        %1075 = vrot.lane.b32.xlu0 %v944, 8
        %v1076 = vpop.permute.xlu0 %1075
        %1077 = vrot.lane.b32.xlu0 %v946, 8
        %v1078 = vpop.permute.xlu0 %1077
        %1079 = vrot.lane.b32.xlu0 %v948, 8
        %v1080 = vpop.permute.xlu0 %1079
        %1081 = vrot.lane.b32.xlu0 %v950, 8
        %v1082 = vpop.permute.xlu0 %1081
        %1083 = vrot.lane.b32.xlu0 %v953, 8
        %v1084 = vpop.permute.xlu0 %1083
        %1085 = vrot.lane.b32.xlu0 %v955, 8
        %v1086 = vpop.permute.xlu0 %1085
        %1087 = vrot.lane.b32.xlu0 %v957, 8
        %v1088 = vpop.permute.xlu0 %1087
        %1089 = vrot.lane.b32.xlu0 %v959, 8
        %v1090 = vpop.permute.xlu0 %1089
        %1091 = vrot.lane.b32.xlu0 %v962, 8
        %v1092 = vpop.permute.xlu0 %1091
        %1093 = vrot.lane.b32.xlu0 %v964, 8
        %v1094 = vpop.permute.xlu0 %1093
        %1095 = vrot.lane.b32.xlu0 %v966, 8
        %v1096 = vpop.permute.xlu0 %1095
        %1097 = vrot.lane.b32.xlu0 %v968, 8
        %v1098 = vpop.permute.xlu0 %1097
        %1099 = vrot.lane.b32.xlu0 %v971, 8
        %v1100 = vpop.permute.xlu0 %1099
        %1101 = vrot.lane.b32.xlu0 %v973, 8
        %v1102 = vpop.permute.xlu0 %1101
        %1103 = vrot.lane.b32.xlu0 %v975, 8
        %v1104 = vpop.permute.xlu0 %1103
        %1105 = vrot.lane.b32.xlu0 %v977, 8
        %v1106 = vpop.permute.xlu0 %1105
        %1107 = vrot.lane.b32.xlu0 %v980, 8
        %v1108 = vpop.permute.xlu0 %1107
        %1109 = vrot.lane.b32.xlu0 %v982, 8
        %v1110 = vpop.permute.xlu0 %1109
        %1111 = vrot.lane.b32.xlu0 %v984, 8
        %v1112 = vpop.permute.xlu0 %1111
        %1113 = vrot.lane.b32.xlu0 %v986, 8
        %v1114 = vpop.permute.xlu0 %1113
        %1183 = vrot.lane.b32.xlu0 %v340, 12
        %v1184 = vpop.permute.xlu0 %1183
        %1185 = vrot.lane.b32.xlu0 %v341, 12
        %v1186 = vpop.permute.xlu0 %1185
        %1187 = vrot.lane.b32.xlu0 %v342, 12
        %v1188 = vpop.permute.xlu0 %1187
        %1189 = vrot.lane.b32.xlu0 %v343, 12
        %v1190 = vpop.permute.xlu0 %1189
        %1191 = vrot.lane.b32.xlu0 %v345, 12
        %v1192 = vpop.permute.xlu0 %1191
        %1193 = vrot.lane.b32.xlu0 %v346, 12
        %v1194 = vpop.permute.xlu0 %1193
        %1195 = vrot.lane.b32.xlu0 %v347, 12
        %v1196 = vpop.permute.xlu0 %1195
        %1197 = vrot.lane.b32.xlu0 %v348, 12
        %v1198 = vpop.permute.xlu0 %1197
        %1199 = vrot.lane.b32.xlu0 %v350, 12
        %v1200 = vpop.permute.xlu0 %1199
        %1201 = vrot.lane.b32.xlu0 %v351, 12
        %v1202 = vpop.permute.xlu0 %1201
        %1203 = vrot.lane.b32.xlu0 %v352, 12
        %v1204 = vpop.permute.xlu0 %1203
        %1205 = vrot.lane.b32.xlu0 %v353, 12
        %v1206 = vpop.permute.xlu0 %1205
        %1207 = vrot.lane.b32.xlu0 %v355, 12
        %v1208 = vpop.permute.xlu0 %1207
        %1209 = vrot.lane.b32.xlu0 %v356, 12
        %v1210 = vpop.permute.xlu0 %1209
        %1211 = vrot.lane.b32.xlu0 %v357, 12
        %v1212 = vpop.permute.xlu0 %1211
        %1213 = vrot.lane.b32.xlu0 %v358, 12
        %v1214 = vpop.permute.xlu0 %1213
        %1215 = vrot.lane.b32.xlu0 %v360, 12
        %v1216 = vpop.permute.xlu0 %1215
        %1217 = vrot.lane.b32.xlu0 %v361, 12
        %v1218 = vpop.permute.xlu0 %1217
        %1219 = vrot.lane.b32.xlu0 %v362, 12
        %v1220 = vpop.permute.xlu0 %1219
        %1221 = vrot.lane.b32.xlu0 %v363, 12
        %v1222 = vpop.permute.xlu0 %1221
        %1223 = vrot.lane.b32.xlu0 %v365, 12
        %v1224 = vpop.permute.xlu0 %1223
        %1225 = vrot.lane.b32.xlu0 %v366, 12
        %v1226 = vpop.permute.xlu0 %1225
        %1227 = vrot.lane.b32.xlu0 %v367, 12
        %v1228 = vpop.permute.xlu0 %1227
        %1229 = vrot.lane.b32.xlu0 %v368, 12
        %v1230 = vpop.permute.xlu0 %1229
        %1231 = vrot.lane.b32.xlu0 %v370, 12
        %v1232 = vpop.permute.xlu0 %1231
        %1233 = vrot.lane.b32.xlu0 %v371, 12
        %v1234 = vpop.permute.xlu0 %1233
        %1235 = vrot.lane.b32.xlu0 %v372, 12
        %v1236 = vpop.permute.xlu0 %1235
        %1237 = vrot.lane.b32.xlu0 %v373, 12
        %v1238 = vpop.permute.xlu0 %1237
        %1239 = vrot.lane.b32.xlu0 %v375, 12
        %v1240 = vpop.permute.xlu0 %1239
        %1241 = vrot.lane.b32.xlu0 %v376, 12
        %v1242 = vpop.permute.xlu0 %1241
        %1243 = vrot.lane.b32.xlu0 %v377, 12
        %v1244 = vpop.permute.xlu0 %1243
        %1245 = vrot.lane.b32.xlu0 %v378, 12
        %v1246 = vpop.permute.xlu0 %1245
        %1247 = vrot.lane.b32.xlu0 %v380, 12
        %v1248 = vpop.permute.xlu0 %1247
        %1249 = vrot.lane.b32.xlu0 %v381, 12
        %v1250 = vpop.permute.xlu0 %1249
        %1251 = vrot.lane.b32.xlu0 %v382, 12
        %v1252 = vpop.permute.xlu0 %1251
        %1253 = vrot.lane.b32.xlu0 %v383, 12
        %v1254 = vpop.permute.xlu0 %1253
        %1255 = vrot.lane.b32.xlu0 %v385, 12
        %v1256 = vpop.permute.xlu0 %1255
        %1257 = vrot.lane.b32.xlu0 %v386, 12
        %v1258 = vpop.permute.xlu0 %1257
        %1259 = vrot.lane.b32.xlu0 %v387, 12
        %v1260 = vpop.permute.xlu0 %1259
        %1261 = vrot.lane.b32.xlu0 %v388, 12
        %v1262 = vpop.permute.xlu0 %1261
        %1263 = vrot.lane.b32.xlu0 %v390, 12
        %v1264 = vpop.permute.xlu0 %1263
        %1265 = vrot.lane.b32.xlu0 %v391, 12
        %v1266 = vpop.permute.xlu0 %1265
        %1267 = vrot.lane.b32.xlu0 %v392, 12
        %v1268 = vpop.permute.xlu0 %1267
        %1269 = vrot.lane.b32.xlu0 %v393, 12
        %v1270 = vpop.permute.xlu0 %1269
        %1271 = vrot.lane.b32.xlu0 %v395, 12
        %v1272 = vpop.permute.xlu0 %1271
        %1273 = vrot.lane.b32.xlu0 %v396, 12
        %v1274 = vpop.permute.xlu0 %1273
        %1275 = vrot.lane.b32.xlu0 %v397, 12
        %v1276 = vpop.permute.xlu0 %1275
        %1277 = vrot.lane.b32.xlu0 %v398, 12
        %v1278 = vpop.permute.xlu0 %1277
        %1279 = vrot.lane.b32.xlu0 %v400, 12
        %v1280 = vpop.permute.xlu0 %1279
        %1281 = vrot.lane.b32.xlu0 %v401, 12
        %v1282 = vpop.permute.xlu0 %1281
        %1283 = vrot.lane.b32.xlu0 %v402, 12
        %v1284 = vpop.permute.xlu0 %1283
        %1285 = vrot.lane.b32.xlu0 %v403, 12
        %v1286 = vpop.permute.xlu0 %1285
        %1287 = vrot.lane.b32.xlu0 %v405, 12
        %v1288 = vpop.permute.xlu0 %1287
        %1289 = vrot.lane.b32.xlu0 %v406, 12
        %v1290 = vpop.permute.xlu0 %1289
        %1291 = vrot.lane.b32.xlu0 %v407, 12
        %v1292 = vpop.permute.xlu0 %1291
        %1293 = vrot.lane.b32.xlu0 %v408, 12
        %v1294 = vpop.permute.xlu0 %1293
        %1295 = vrot.lane.b32.xlu0 %v410, 12
        %v1296 = vpop.permute.xlu0 %1295
        %1297 = vrot.lane.b32.xlu0 %v411, 12
        %v1298 = vpop.permute.xlu0 %1297
        %1299 = vrot.lane.b32.xlu0 %v412, 12
        %v1300 = vpop.permute.xlu0 %1299
        %1301 = vrot.lane.b32.xlu0 %v413, 12
        %v1302 = vpop.permute.xlu0 %1301
        %1303 = vrot.lane.b32.xlu0 %v415, 12
        %v1304 = vpop.permute.xlu0 %1303
        %1305 = vrot.lane.b32.xlu0 %v416, 12
        %v1306 = vpop.permute.xlu0 %1305
        %1307 = vrot.lane.b32.xlu0 %v417, 12
        %v1308 = vpop.permute.xlu0 %1307
        %1309 = vrot.lane.b32.xlu0 %v418, 12
        %v1310 = vpop.permute.xlu0 %1309
        %v1376 = vrot.slane %v415, 1
        %v1377 = vrot.slane %v416, 1
        %v1378 = vsel %vm505, %v1376, %v1377
        %v1379 = vrot.slane %v417, 1
        %v1380 = vsel %vm505, %v1377, %v1379
        %v1381 = vrot.slane %v418, 1
        %v1382 = vsel %vm505, %v1379, %v1381
        %v1383 = vrot.slane %v419, 1
        %v1384 = vsel %vm505, %v1381, %v1383
        %1385 = vrot.lane.b32.xlu0 %v517, 16
        %v1386 = vpop.permute.xlu0 %1385
        %1387 = vrot.lane.b32.xlu0 %v519, 16
        %v1388 = vpop.permute.xlu0 %1387
        %1389 = vrot.lane.b32.xlu0 %v521, 16
        %v1390 = vpop.permute.xlu0 %1389
        %1391 = vrot.lane.b32.xlu0 %v523, 16
        %v1392 = vpop.permute.xlu0 %1391
        %1393 = vrot.lane.b32.xlu0 %v526, 16
        %v1394 = vpop.permute.xlu0 %1393
        %1395 = vrot.lane.b32.xlu0 %v528, 16
        %v1396 = vpop.permute.xlu0 %1395
        %1397 = vrot.lane.b32.xlu0 %v530, 16
        %v1398 = vpop.permute.xlu0 %1397
        %1399 = vrot.lane.b32.xlu0 %v532, 16
        %v1400 = vpop.permute.xlu0 %1399
        %1401 = vrot.lane.b32.xlu0 %v535, 16
        %v1402 = vpop.permute.xlu0 %1401
        %1403 = vrot.lane.b32.xlu0 %v537, 16
        %v1404 = vpop.permute.xlu0 %1403
        %1405 = vrot.lane.b32.xlu0 %v539, 16
        %v1406 = vpop.permute.xlu0 %1405
        %1407 = vrot.lane.b32.xlu0 %v541, 16
        %v1408 = vpop.permute.xlu0 %1407
        %1409 = vrot.lane.b32.xlu0 %v544, 16
        %v1410 = vpop.permute.xlu0 %1409
        %1411 = vrot.lane.b32.xlu0 %v546, 16
        %v1412 = vpop.permute.xlu0 %1411
        %1413 = vrot.lane.b32.xlu0 %v548, 16
        %v1414 = vpop.permute.xlu0 %1413
        %1415 = vrot.lane.b32.xlu0 %v550, 16
        %v1416 = vpop.permute.xlu0 %1415
        %1417 = vrot.lane.b32.xlu0 %v553, 16
        %v1418 = vpop.permute.xlu0 %1417
        %1419 = vrot.lane.b32.xlu0 %v555, 16
        %v1420 = vpop.permute.xlu0 %1419
        %1421 = vrot.lane.b32.xlu0 %v557, 16
        %v1422 = vpop.permute.xlu0 %1421
        %1423 = vrot.lane.b32.xlu0 %v559, 16
        %v1424 = vpop.permute.xlu0 %1423
        %1425 = vrot.lane.b32.xlu0 %v562, 16
        %v1426 = vpop.permute.xlu0 %1425
        %1427 = vrot.lane.b32.xlu0 %v564, 16
        %v1428 = vpop.permute.xlu0 %1427
        %1429 = vrot.lane.b32.xlu0 %v566, 16
        %v1430 = vpop.permute.xlu0 %1429
        %1431 = vrot.lane.b32.xlu0 %v568, 16
        %v1432 = vpop.permute.xlu0 %1431
        %1433 = vrot.lane.b32.xlu0 %v571, 16
        %v1434 = vpop.permute.xlu0 %1433
        %1435 = vrot.lane.b32.xlu0 %v573, 16
        %v1436 = vpop.permute.xlu0 %1435
        %1437 = vrot.lane.b32.xlu0 %v575, 16
        %v1438 = vpop.permute.xlu0 %1437
        %1439 = vrot.lane.b32.xlu0 %v577, 16
        %v1440 = vpop.permute.xlu0 %1439
        %1441 = vrot.lane.b32.xlu0 %v580, 16
        %v1442 = vpop.permute.xlu0 %1441
        %1443 = vrot.lane.b32.xlu0 %v582, 16
        %v1444 = vpop.permute.xlu0 %1443
        %1445 = vrot.lane.b32.xlu0 %v584, 16
        %v1446 = vpop.permute.xlu0 %1445
        %1447 = vrot.lane.b32.xlu0 %v586, 16
        %v1448 = vpop.permute.xlu0 %1447
        %1449 = vrot.lane.b32.xlu0 %v589, 16
        %v1450 = vpop.permute.xlu0 %1449
        %1451 = vrot.lane.b32.xlu0 %v591, 16
        %v1452 = vpop.permute.xlu0 %1451
        %1453 = vrot.lane.b32.xlu0 %v593, 16
        %v1454 = vpop.permute.xlu0 %1453
        %1455 = vrot.lane.b32.xlu0 %v595, 16
        %v1456 = vpop.permute.xlu0 %1455
        %1457 = vrot.lane.b32.xlu0 %v598, 16
        %v1458 = vpop.permute.xlu0 %1457
        %1459 = vrot.lane.b32.xlu0 %v600, 16
        %v1460 = vpop.permute.xlu0 %1459
        %1461 = vrot.lane.b32.xlu0 %v602, 16
        %v1462 = vpop.permute.xlu0 %1461
        %1463 = vrot.lane.b32.xlu0 %v604, 16
        %v1464 = vpop.permute.xlu0 %1463
        %1465 = vrot.lane.b32.xlu0 %v607, 16
        %v1466 = vpop.permute.xlu0 %1465
        %1467 = vrot.lane.b32.xlu0 %v609, 16
        %v1468 = vpop.permute.xlu0 %1467
        %1469 = vrot.lane.b32.xlu0 %v611, 16
        %v1470 = vpop.permute.xlu0 %1469
        %1471 = vrot.lane.b32.xlu0 %v613, 16
        %v1472 = vpop.permute.xlu0 %1471
        %1473 = vrot.lane.b32.xlu0 %v616, 16
        %v1474 = vpop.permute.xlu0 %1473
        %1475 = vrot.lane.b32.xlu0 %v618, 16
        %v1476 = vpop.permute.xlu0 %1475
        %1477 = vrot.lane.b32.xlu0 %v620, 16
        %v1478 = vpop.permute.xlu0 %1477
        %1479 = vrot.lane.b32.xlu0 %v622, 16
        %v1480 = vpop.permute.xlu0 %1479
        %1481 = vrot.lane.b32.xlu0 %v625, 16
        %v1482 = vpop.permute.xlu0 %1481
        %1483 = vrot.lane.b32.xlu0 %v627, 16
        %v1484 = vpop.permute.xlu0 %1483
        %1485 = vrot.lane.b32.xlu0 %v629, 16
        %v1486 = vpop.permute.xlu0 %1485
        %1487 = vrot.lane.b32.xlu0 %v631, 16
        %v1488 = vpop.permute.xlu0 %1487
        %1489 = vrot.lane.b32.xlu0 %v634, 16
        %v1490 = vpop.permute.xlu0 %1489
        %1491 = vrot.lane.b32.xlu0 %v636, 16
        %v1492 = vpop.permute.xlu0 %1491
        %1493 = vrot.lane.b32.xlu0 %v638, 16
        %v1494 = vpop.permute.xlu0 %1493
        %1495 = vrot.lane.b32.xlu0 %v640, 16
        %v1496 = vpop.permute.xlu0 %1495
        %1497 = vrot.lane.b32.xlu0 %v643, 16
        %v1498 = vpop.permute.xlu0 %1497
        %1499 = vrot.lane.b32.xlu0 %v645, 16
        %v1500 = vpop.permute.xlu0 %1499
        %1501 = vrot.lane.b32.xlu0 %v647, 16
        %v1502 = vpop.permute.xlu0 %1501
        %1503 = vrot.lane.b32.xlu0 %v649, 16
        %v1504 = vpop.permute.xlu0 %1503
        %1505 = vrot.lane.b32.xlu0 %v1378, 16
        %v1506 = vpop.permute.xlu0 %1505
        %1507 = vrot.lane.b32.xlu0 %v1380, 16
        %v1508 = vpop.permute.xlu0 %1507
        %1509 = vrot.lane.b32.xlu0 %v1382, 16
        %v1510 = vpop.permute.xlu0 %1509
        %1511 = vrot.lane.b32.xlu0 %v1384, 16
        %v1512 = vpop.permute.xlu0 %1511
        %v1577 = vrot.slane %v415, 2
        %v1578 = vrot.slane %v416, 2
        %v1579 = vsel %vm842, %v1577, %v1578
        %v1580 = vrot.slane %v417, 2
        %v1581 = vsel %vm842, %v1578, %v1580
        %v1582 = vrot.slane %v418, 2
        %v1583 = vsel %vm842, %v1580, %v1582
        %v1584 = vrot.slane %v419, 2
        %v1585 = vsel %vm842, %v1582, %v1584
        %1586 = vrot.lane.b32.xlu0 %v854, 20
        %v1587 = vpop.permute.xlu0 %1586
        %1588 = vrot.lane.b32.xlu0 %v856, 20
        %v1589 = vpop.permute.xlu0 %1588
        %1590 = vrot.lane.b32.xlu0 %v858, 20
        %v1591 = vpop.permute.xlu0 %1590
        %1592 = vrot.lane.b32.xlu0 %v860, 20
        %v1593 = vpop.permute.xlu0 %1592
        %1594 = vrot.lane.b32.xlu0 %v863, 20
        %v1595 = vpop.permute.xlu0 %1594
        %1596 = vrot.lane.b32.xlu0 %v865, 20
        %v1597 = vpop.permute.xlu0 %1596
        %1598 = vrot.lane.b32.xlu0 %v867, 20
        %v1599 = vpop.permute.xlu0 %1598
        %1600 = vrot.lane.b32.xlu0 %v869, 20
        %v1601 = vpop.permute.xlu0 %1600
        %1602 = vrot.lane.b32.xlu0 %v872, 20
        %v1603 = vpop.permute.xlu0 %1602
        %1604 = vrot.lane.b32.xlu0 %v874, 20
        %v1605 = vpop.permute.xlu0 %1604
        %1606 = vrot.lane.b32.xlu0 %v876, 20
        %v1607 = vpop.permute.xlu0 %1606
        %1608 = vrot.lane.b32.xlu0 %v878, 20
        %v1609 = vpop.permute.xlu0 %1608
        %1610 = vrot.lane.b32.xlu0 %v881, 20
        %v1611 = vpop.permute.xlu0 %1610
        %1612 = vrot.lane.b32.xlu0 %v883, 20
        %v1613 = vpop.permute.xlu0 %1612
        %1614 = vrot.lane.b32.xlu0 %v885, 20
        %v1615 = vpop.permute.xlu0 %1614
        %1616 = vrot.lane.b32.xlu0 %v887, 20
        %v1617 = vpop.permute.xlu0 %1616
        %1618 = vrot.lane.b32.xlu0 %v890, 20
        %v1619 = vpop.permute.xlu0 %1618
        %1620 = vrot.lane.b32.xlu0 %v892, 20
        %v1621 = vpop.permute.xlu0 %1620
        %1622 = vrot.lane.b32.xlu0 %v894, 20
        %v1623 = vpop.permute.xlu0 %1622
        %1624 = vrot.lane.b32.xlu0 %v896, 20
        %v1625 = vpop.permute.xlu0 %1624
        %1626 = vrot.lane.b32.xlu0 %v899, 20
        %v1627 = vpop.permute.xlu0 %1626
        %1628 = vrot.lane.b32.xlu0 %v901, 20
        %v1629 = vpop.permute.xlu0 %1628
        %1630 = vrot.lane.b32.xlu0 %v903, 20
        %v1631 = vpop.permute.xlu0 %1630
        %1632 = vrot.lane.b32.xlu0 %v905, 20
        %v1633 = vpop.permute.xlu0 %1632
        %1634 = vrot.lane.b32.xlu0 %v908, 20
        %v1635 = vpop.permute.xlu0 %1634
        %1636 = vrot.lane.b32.xlu0 %v910, 20
        %v1637 = vpop.permute.xlu0 %1636
        %1638 = vrot.lane.b32.xlu0 %v912, 20
        %v1639 = vpop.permute.xlu0 %1638
        %1640 = vrot.lane.b32.xlu0 %v914, 20
        %v1641 = vpop.permute.xlu0 %1640
        %1642 = vrot.lane.b32.xlu0 %v917, 20
        %v1643 = vpop.permute.xlu0 %1642
        %1644 = vrot.lane.b32.xlu0 %v919, 20
        %v1645 = vpop.permute.xlu0 %1644
        %1646 = vrot.lane.b32.xlu0 %v921, 20
        %v1647 = vpop.permute.xlu0 %1646
        %1648 = vrot.lane.b32.xlu0 %v923, 20
        %v1649 = vpop.permute.xlu0 %1648
        %1650 = vrot.lane.b32.xlu0 %v926, 20
        %v1651 = vpop.permute.xlu0 %1650
        %1652 = vrot.lane.b32.xlu0 %v928, 20
        %v1653 = vpop.permute.xlu0 %1652
        %1654 = vrot.lane.b32.xlu0 %v930, 20
        %v1655 = vpop.permute.xlu0 %1654
        %1656 = vrot.lane.b32.xlu0 %v932, 20
        %v1657 = vpop.permute.xlu0 %1656
        %1658 = vrot.lane.b32.xlu0 %v935, 20
        %v1659 = vpop.permute.xlu0 %1658
        %1660 = vrot.lane.b32.xlu0 %v937, 20
        %v1661 = vpop.permute.xlu0 %1660
        %1662 = vrot.lane.b32.xlu0 %v939, 20
        %v1663 = vpop.permute.xlu0 %1662
        %1664 = vrot.lane.b32.xlu0 %v941, 20
        %v1665 = vpop.permute.xlu0 %1664
        %1666 = vrot.lane.b32.xlu0 %v944, 20
        %v1667 = vpop.permute.xlu0 %1666
        %1668 = vrot.lane.b32.xlu0 %v946, 20
        %v1669 = vpop.permute.xlu0 %1668
        %1670 = vrot.lane.b32.xlu0 %v948, 20
        %v1671 = vpop.permute.xlu0 %1670
        %1672 = vrot.lane.b32.xlu0 %v950, 20
        %v1673 = vpop.permute.xlu0 %1672
        %1674 = vrot.lane.b32.xlu0 %v953, 20
        %v1675 = vpop.permute.xlu0 %1674
        %1676 = vrot.lane.b32.xlu0 %v955, 20
        %v1677 = vpop.permute.xlu0 %1676
        %1678 = vrot.lane.b32.xlu0 %v957, 20
        %v1679 = vpop.permute.xlu0 %1678
        %1680 = vrot.lane.b32.xlu0 %v959, 20
        %v1681 = vpop.permute.xlu0 %1680
        %1682 = vrot.lane.b32.xlu0 %v962, 20
        %v1683 = vpop.permute.xlu0 %1682
        %1684 = vrot.lane.b32.xlu0 %v964, 20
        %v1685 = vpop.permute.xlu0 %1684
        %1686 = vrot.lane.b32.xlu0 %v966, 20
        %v1687 = vpop.permute.xlu0 %1686
        %1688 = vrot.lane.b32.xlu0 %v968, 20
        %v1689 = vpop.permute.xlu0 %1688
        %1690 = vrot.lane.b32.xlu0 %v971, 20
        %v1691 = vpop.permute.xlu0 %1690
        %1692 = vrot.lane.b32.xlu0 %v973, 20
        %v1693 = vpop.permute.xlu0 %1692
        %1694 = vrot.lane.b32.xlu0 %v975, 20
        %v1695 = vpop.permute.xlu0 %1694
        %1696 = vrot.lane.b32.xlu0 %v977, 20
        %v1697 = vpop.permute.xlu0 %1696
        %1698 = vrot.lane.b32.xlu0 %v980, 20
        %v1699 = vpop.permute.xlu0 %1698
        %1700 = vrot.lane.b32.xlu0 %v982, 20
        %v1701 = vpop.permute.xlu0 %1700
        %1702 = vrot.lane.b32.xlu0 %v984, 20
        %v1703 = vpop.permute.xlu0 %1702
        %1704 = vrot.lane.b32.xlu0 %v986, 20
        %v1705 = vpop.permute.xlu0 %1704
        %1706 = vrot.lane.b32.xlu0 %v1579, 20
        %v1707 = vpop.permute.xlu0 %1706
        %1708 = vrot.lane.b32.xlu0 %v1581, 20
        %v1709 = vpop.permute.xlu0 %1708
        %1710 = vrot.lane.b32.xlu0 %v1583, 20
        %v1711 = vpop.permute.xlu0 %1710
        %1712 = vrot.lane.b32.xlu0 %v1585, 20
        %v1713 = vpop.permute.xlu0 %1712
        %1782 = vrot.lane.b32.xlu0 %v345, 24
        %v1783 = vpop.permute.xlu0 %1782
        %1784 = vrot.lane.b32.xlu0 %v346, 24
        %v1785 = vpop.permute.xlu0 %1784
        %1786 = vrot.lane.b32.xlu0 %v347, 24
        %v1787 = vpop.permute.xlu0 %1786
        %1788 = vrot.lane.b32.xlu0 %v348, 24
        %v1789 = vpop.permute.xlu0 %1788
        %1790 = vrot.lane.b32.xlu0 %v350, 24
        %v1791 = vpop.permute.xlu0 %1790
        %1792 = vrot.lane.b32.xlu0 %v351, 24
        %v1793 = vpop.permute.xlu0 %1792
        %1794 = vrot.lane.b32.xlu0 %v352, 24
        %v1795 = vpop.permute.xlu0 %1794
        %1796 = vrot.lane.b32.xlu0 %v353, 24
        %v1797 = vpop.permute.xlu0 %1796
        %1798 = vrot.lane.b32.xlu0 %v355, 24
        %v1799 = vpop.permute.xlu0 %1798
        %1800 = vrot.lane.b32.xlu0 %v356, 24
        %v1801 = vpop.permute.xlu0 %1800
        %1802 = vrot.lane.b32.xlu0 %v357, 24
        %v1803 = vpop.permute.xlu0 %1802
        %1804 = vrot.lane.b32.xlu0 %v358, 24
        %v1805 = vpop.permute.xlu0 %1804
        %1806 = vrot.lane.b32.xlu0 %v360, 24
        %v1807 = vpop.permute.xlu0 %1806
        %1808 = vrot.lane.b32.xlu0 %v361, 24
        %v1809 = vpop.permute.xlu0 %1808
        %1810 = vrot.lane.b32.xlu0 %v362, 24
        %v1811 = vpop.permute.xlu0 %1810
        %1812 = vrot.lane.b32.xlu0 %v363, 24
        %v1813 = vpop.permute.xlu0 %1812
        %1814 = vrot.lane.b32.xlu0 %v365, 24
        %v1815 = vpop.permute.xlu0 %1814
        %1816 = vrot.lane.b32.xlu0 %v366, 24
        %v1817 = vpop.permute.xlu0 %1816
        %1818 = vrot.lane.b32.xlu0 %v367, 24
        %v1819 = vpop.permute.xlu0 %1818
        %1820 = vrot.lane.b32.xlu0 %v368, 24
        %v1821 = vpop.permute.xlu0 %1820
        %1822 = vrot.lane.b32.xlu0 %v370, 24
        %v1823 = vpop.permute.xlu0 %1822
        %1824 = vrot.lane.b32.xlu0 %v371, 24
        %v1825 = vpop.permute.xlu0 %1824
        %1826 = vrot.lane.b32.xlu0 %v372, 24
        %v1827 = vpop.permute.xlu0 %1826
        %1828 = vrot.lane.b32.xlu0 %v373, 24
        %v1829 = vpop.permute.xlu0 %1828
        %1830 = vrot.lane.b32.xlu0 %v375, 24
        %v1831 = vpop.permute.xlu0 %1830
        %1832 = vrot.lane.b32.xlu0 %v376, 24
        %v1833 = vpop.permute.xlu0 %1832
        %1834 = vrot.lane.b32.xlu0 %v377, 24
        %v1835 = vpop.permute.xlu0 %1834
        %1836 = vrot.lane.b32.xlu0 %v378, 24
        %v1837 = vpop.permute.xlu0 %1836
        %1838 = vrot.lane.b32.xlu0 %v380, 24
        %v1839 = vpop.permute.xlu0 %1838
        %1840 = vrot.lane.b32.xlu0 %v381, 24
        %v1841 = vpop.permute.xlu0 %1840
        %1842 = vrot.lane.b32.xlu0 %v382, 24
        %v1843 = vpop.permute.xlu0 %1842
        %1844 = vrot.lane.b32.xlu0 %v383, 24
        %v1845 = vpop.permute.xlu0 %1844
        %1846 = vrot.lane.b32.xlu0 %v385, 24
        %v1847 = vpop.permute.xlu0 %1846
        %1848 = vrot.lane.b32.xlu0 %v386, 24
        %v1849 = vpop.permute.xlu0 %1848
        %1850 = vrot.lane.b32.xlu0 %v387, 24
        %v1851 = vpop.permute.xlu0 %1850
        %1852 = vrot.lane.b32.xlu0 %v388, 24
        %v1853 = vpop.permute.xlu0 %1852
        %1854 = vrot.lane.b32.xlu0 %v390, 24
        %v1855 = vpop.permute.xlu0 %1854
        %1856 = vrot.lane.b32.xlu0 %v391, 24
        %v1857 = vpop.permute.xlu0 %1856
        %1858 = vrot.lane.b32.xlu0 %v392, 24
        %v1859 = vpop.permute.xlu0 %1858
        %1860 = vrot.lane.b32.xlu0 %v393, 24
        %v1861 = vpop.permute.xlu0 %1860
        %1862 = vrot.lane.b32.xlu0 %v395, 24
        %v1863 = vpop.permute.xlu0 %1862
        %1864 = vrot.lane.b32.xlu0 %v396, 24
        %v1865 = vpop.permute.xlu0 %1864
        %1866 = vrot.lane.b32.xlu0 %v397, 24
        %v1867 = vpop.permute.xlu0 %1866
        %1868 = vrot.lane.b32.xlu0 %v398, 24
        %v1869 = vpop.permute.xlu0 %1868
        %1870 = vrot.lane.b32.xlu0 %v400, 24
        %v1871 = vpop.permute.xlu0 %1870
        %1872 = vrot.lane.b32.xlu0 %v401, 24
        %v1873 = vpop.permute.xlu0 %1872
        %1874 = vrot.lane.b32.xlu0 %v402, 24
        %v1875 = vpop.permute.xlu0 %1874
        %1876 = vrot.lane.b32.xlu0 %v403, 24
        %v1877 = vpop.permute.xlu0 %1876
        %1878 = vrot.lane.b32.xlu0 %v405, 24
        %v1879 = vpop.permute.xlu0 %1878
        %1880 = vrot.lane.b32.xlu0 %v406, 24
        %v1881 = vpop.permute.xlu0 %1880
        %1882 = vrot.lane.b32.xlu0 %v407, 24
        %v1883 = vpop.permute.xlu0 %1882
        %1884 = vrot.lane.b32.xlu0 %v408, 24
        %v1885 = vpop.permute.xlu0 %1884
        %1886 = vrot.lane.b32.xlu0 %v410, 24
        %v1887 = vpop.permute.xlu0 %1886
        %1888 = vrot.lane.b32.xlu0 %v411, 24
        %v1889 = vpop.permute.xlu0 %1888
        %1890 = vrot.lane.b32.xlu0 %v412, 24
        %v1891 = vpop.permute.xlu0 %1890
        %1892 = vrot.lane.b32.xlu0 %v413, 24
        %v1893 = vpop.permute.xlu0 %1892
        %1894 = vrot.lane.b32.xlu0 %v415, 24
        %v1895 = vpop.permute.xlu0 %1894
        %1896 = vrot.lane.b32.xlu0 %v416, 24
        %v1897 = vpop.permute.xlu0 %1896
        %1898 = vrot.lane.b32.xlu0 %v417, 24
        %v1899 = vpop.permute.xlu0 %1898
        %1900 = vrot.lane.b32.xlu0 %v418, 24
        %v1901 = vpop.permute.xlu0 %1900
        %1902 = vrot.lane.b32.xlu0 %v420, 24
        %v1903 = vpop.permute.xlu0 %1902
        %1904 = vrot.lane.b32.xlu0 %v421, 24
        %v1905 = vpop.permute.xlu0 %1904
        %1906 = vrot.lane.b32.xlu0 %v422, 24
        %v1907 = vpop.permute.xlu0 %1906
        %1908 = vrot.lane.b32.xlu0 %v423, 24
        %v1909 = vpop.permute.xlu0 %1908
        %v1975 = vrot.slane %v420, 1
        %v1976 = vrot.slane %v421, 1
        %v1977 = vsel %vm505, %v1975, %v1976
        %v1978 = vrot.slane %v422, 1
        %v1979 = vsel %vm505, %v1976, %v1978
        %v1980 = vrot.slane %v423, 1
        %v1981 = vsel %vm505, %v1978, %v1980
        %v1982 = vrot.slane %v424, 1
        %v1983 = vsel %vm505, %v1980, %v1982
        %1984 = vrot.lane.b32.xlu0 %v526, 28
        %v1985 = vpop.permute.xlu0 %1984
        %1986 = vrot.lane.b32.xlu0 %v528, 28
        %v1987 = vpop.permute.xlu0 %1986
        %1988 = vrot.lane.b32.xlu0 %v530, 28
        %v1989 = vpop.permute.xlu0 %1988
        %1990 = vrot.lane.b32.xlu0 %v532, 28
        %v1991 = vpop.permute.xlu0 %1990
        %1992 = vrot.lane.b32.xlu0 %v535, 28
        %v1993 = vpop.permute.xlu0 %1992
        %1994 = vrot.lane.b32.xlu0 %v537, 28
        %v1995 = vpop.permute.xlu0 %1994
        %1996 = vrot.lane.b32.xlu0 %v539, 28
        %v1997 = vpop.permute.xlu0 %1996
        %1998 = vrot.lane.b32.xlu0 %v541, 28
        %v1999 = vpop.permute.xlu0 %1998
        %2000 = vrot.lane.b32.xlu0 %v544, 28
        %v2001 = vpop.permute.xlu0 %2000
        %2002 = vrot.lane.b32.xlu0 %v546, 28
        %v2003 = vpop.permute.xlu0 %2002
        %2004 = vrot.lane.b32.xlu0 %v548, 28
        %v2005 = vpop.permute.xlu0 %2004
        %2006 = vrot.lane.b32.xlu0 %v550, 28
        %v2007 = vpop.permute.xlu0 %2006
        %2008 = vrot.lane.b32.xlu0 %v553, 28
        %v2009 = vpop.permute.xlu0 %2008
        %2010 = vrot.lane.b32.xlu0 %v555, 28
        %v2011 = vpop.permute.xlu0 %2010
        %2012 = vrot.lane.b32.xlu0 %v557, 28
        %v2013 = vpop.permute.xlu0 %2012
        %2014 = vrot.lane.b32.xlu0 %v559, 28
        %v2015 = vpop.permute.xlu0 %2014
        %2016 = vrot.lane.b32.xlu0 %v562, 28
        %v2017 = vpop.permute.xlu0 %2016
        %2018 = vrot.lane.b32.xlu0 %v564, 28
        %v2019 = vpop.permute.xlu0 %2018
        %2020 = vrot.lane.b32.xlu0 %v566, 28
        %v2021 = vpop.permute.xlu0 %2020
        %2022 = vrot.lane.b32.xlu0 %v568, 28
        %v2023 = vpop.permute.xlu0 %2022
        %2024 = vrot.lane.b32.xlu0 %v571, 28
        %v2025 = vpop.permute.xlu0 %2024
        %2026 = vrot.lane.b32.xlu0 %v573, 28
        %v2027 = vpop.permute.xlu0 %2026
        %2028 = vrot.lane.b32.xlu0 %v575, 28
        %v2029 = vpop.permute.xlu0 %2028
        %2030 = vrot.lane.b32.xlu0 %v577, 28
        %v2031 = vpop.permute.xlu0 %2030
        %2032 = vrot.lane.b32.xlu0 %v580, 28
        %v2033 = vpop.permute.xlu0 %2032
        %2034 = vrot.lane.b32.xlu0 %v582, 28
        %v2035 = vpop.permute.xlu0 %2034
        %2036 = vrot.lane.b32.xlu0 %v584, 28
        %v2037 = vpop.permute.xlu0 %2036
        %2038 = vrot.lane.b32.xlu0 %v586, 28
        %v2039 = vpop.permute.xlu0 %2038
        %2040 = vrot.lane.b32.xlu0 %v589, 28
        %v2041 = vpop.permute.xlu0 %2040
        %2042 = vrot.lane.b32.xlu0 %v591, 28
        %v2043 = vpop.permute.xlu0 %2042
        %2044 = vrot.lane.b32.xlu0 %v593, 28
        %v2045 = vpop.permute.xlu0 %2044
        %2046 = vrot.lane.b32.xlu0 %v595, 28
        %v2047 = vpop.permute.xlu0 %2046
        %2048 = vrot.lane.b32.xlu0 %v598, 28
        %v2049 = vpop.permute.xlu0 %2048
        %2050 = vrot.lane.b32.xlu0 %v600, 28
        %v2051 = vpop.permute.xlu0 %2050
        %2052 = vrot.lane.b32.xlu0 %v602, 28
        %v2053 = vpop.permute.xlu0 %2052
        %2054 = vrot.lane.b32.xlu0 %v604, 28
        %v2055 = vpop.permute.xlu0 %2054
        %2056 = vrot.lane.b32.xlu0 %v607, 28
        %v2057 = vpop.permute.xlu0 %2056
        %2058 = vrot.lane.b32.xlu0 %v609, 28
        %v2059 = vpop.permute.xlu0 %2058
        %2060 = vrot.lane.b32.xlu0 %v611, 28
        %v2061 = vpop.permute.xlu0 %2060
        %2062 = vrot.lane.b32.xlu0 %v613, 28
        %v2063 = vpop.permute.xlu0 %2062
        %2064 = vrot.lane.b32.xlu0 %v616, 28
        %v2065 = vpop.permute.xlu0 %2064
        %2066 = vrot.lane.b32.xlu0 %v618, 28
        %v2067 = vpop.permute.xlu0 %2066
        %2068 = vrot.lane.b32.xlu0 %v620, 28
        %v2069 = vpop.permute.xlu0 %2068
        %2070 = vrot.lane.b32.xlu0 %v622, 28
        %v2071 = vpop.permute.xlu0 %2070
        %2072 = vrot.lane.b32.xlu0 %v625, 28
        %v2073 = vpop.permute.xlu0 %2072
        %2074 = vrot.lane.b32.xlu0 %v627, 28
        %v2075 = vpop.permute.xlu0 %2074
        %2076 = vrot.lane.b32.xlu0 %v629, 28
        %v2077 = vpop.permute.xlu0 %2076
        %2078 = vrot.lane.b32.xlu0 %v631, 28
        %v2079 = vpop.permute.xlu0 %2078
        %2080 = vrot.lane.b32.xlu0 %v634, 28
        %v2081 = vpop.permute.xlu0 %2080
        %2082 = vrot.lane.b32.xlu0 %v636, 28
        %v2083 = vpop.permute.xlu0 %2082
        %2084 = vrot.lane.b32.xlu0 %v638, 28
        %v2085 = vpop.permute.xlu0 %2084
        %2086 = vrot.lane.b32.xlu0 %v640, 28
        %v2087 = vpop.permute.xlu0 %2086
        %2088 = vrot.lane.b32.xlu0 %v643, 28
        %v2089 = vpop.permute.xlu0 %2088
        %2090 = vrot.lane.b32.xlu0 %v645, 28
        %v2091 = vpop.permute.xlu0 %2090
        %2092 = vrot.lane.b32.xlu0 %v647, 28
        %v2093 = vpop.permute.xlu0 %2092
        %2094 = vrot.lane.b32.xlu0 %v649, 28
        %v2095 = vpop.permute.xlu0 %2094
        %2096 = vrot.lane.b32.xlu0 %v1378, 28
        %v2097 = vpop.permute.xlu0 %2096
        %2098 = vrot.lane.b32.xlu0 %v1380, 28
        %v2099 = vpop.permute.xlu0 %2098
        %2100 = vrot.lane.b32.xlu0 %v1382, 28
        %v2101 = vpop.permute.xlu0 %2100
        %2102 = vrot.lane.b32.xlu0 %v1384, 28
        %v2103 = vpop.permute.xlu0 %2102
        %2104 = vrot.lane.b32.xlu0 %v1977, 28
        %v2105 = vpop.permute.xlu0 %2104
        %2106 = vrot.lane.b32.xlu0 %v1979, 28
        %v2107 = vpop.permute.xlu0 %2106
        %2108 = vrot.lane.b32.xlu0 %v1981, 28
        %v2109 = vpop.permute.xlu0 %2108
        %2110 = vrot.lane.b32.xlu0 %v1983, 28
        %v2111 = vpop.permute.xlu0 %2110
        %v2176 = vrot.slane %v420, 2
        %v2177 = vrot.slane %v421, 2
        %v2178 = vsel %vm842, %v2176, %v2177
        %v2179 = vrot.slane %v422, 2
        %v2180 = vsel %vm842, %v2177, %v2179
        %v2181 = vrot.slane %v423, 2
        %v2182 = vsel %vm842, %v2179, %v2181
        %v2183 = vrot.slane %v424, 2
        %v2184 = vsel %vm842, %v2181, %v2183
        %2185 = vrot.lane.b32.xlu0 %v863, 32
        %v2186 = vpop.permute.xlu0 %2185
        %2187 = vrot.lane.b32.xlu0 %v865, 32
        %v2188 = vpop.permute.xlu0 %2187
        %2189 = vrot.lane.b32.xlu0 %v867, 32
        %v2190 = vpop.permute.xlu0 %2189
        %2191 = vrot.lane.b32.xlu0 %v869, 32
        %v2192 = vpop.permute.xlu0 %2191
        %2193 = vrot.lane.b32.xlu0 %v872, 32
        %v2194 = vpop.permute.xlu0 %2193
        %2195 = vrot.lane.b32.xlu0 %v874, 32
        %v2196 = vpop.permute.xlu0 %2195
        %2197 = vrot.lane.b32.xlu0 %v876, 32
        %v2198 = vpop.permute.xlu0 %2197
        %2199 = vrot.lane.b32.xlu0 %v878, 32
        %v2200 = vpop.permute.xlu0 %2199
        %2201 = vrot.lane.b32.xlu0 %v881, 32
        %v2202 = vpop.permute.xlu0 %2201
        %2203 = vrot.lane.b32.xlu0 %v883, 32
        %v2204 = vpop.permute.xlu0 %2203
        %2205 = vrot.lane.b32.xlu0 %v885, 32
        %v2206 = vpop.permute.xlu0 %2205
        %2207 = vrot.lane.b32.xlu0 %v887, 32
        %v2208 = vpop.permute.xlu0 %2207
        %2209 = vrot.lane.b32.xlu0 %v890, 32
        %v2210 = vpop.permute.xlu0 %2209
        %2211 = vrot.lane.b32.xlu0 %v892, 32
        %v2212 = vpop.permute.xlu0 %2211
        %2213 = vrot.lane.b32.xlu0 %v894, 32
        %v2214 = vpop.permute.xlu0 %2213
        %2215 = vrot.lane.b32.xlu0 %v896, 32
        %v2216 = vpop.permute.xlu0 %2215
        %2217 = vrot.lane.b32.xlu0 %v899, 32
        %v2218 = vpop.permute.xlu0 %2217
        %2219 = vrot.lane.b32.xlu0 %v901, 32
        %v2220 = vpop.permute.xlu0 %2219
        %2221 = vrot.lane.b32.xlu0 %v903, 32
        %v2222 = vpop.permute.xlu0 %2221
        %2223 = vrot.lane.b32.xlu0 %v905, 32
        %v2224 = vpop.permute.xlu0 %2223
        %2225 = vrot.lane.b32.xlu0 %v908, 32
        %v2226 = vpop.permute.xlu0 %2225
        %2227 = vrot.lane.b32.xlu0 %v910, 32
        %v2228 = vpop.permute.xlu0 %2227
        %2229 = vrot.lane.b32.xlu0 %v912, 32
        %v2230 = vpop.permute.xlu0 %2229
        %2231 = vrot.lane.b32.xlu0 %v914, 32
        %v2232 = vpop.permute.xlu0 %2231
        %2233 = vrot.lane.b32.xlu0 %v917, 32
        %v2234 = vpop.permute.xlu0 %2233
        %2235 = vrot.lane.b32.xlu0 %v919, 32
        %v2236 = vpop.permute.xlu0 %2235
        %2237 = vrot.lane.b32.xlu0 %v921, 32
        %v2238 = vpop.permute.xlu0 %2237
        %2239 = vrot.lane.b32.xlu0 %v923, 32
        %v2240 = vpop.permute.xlu0 %2239
        %2241 = vrot.lane.b32.xlu0 %v926, 32
        %v2242 = vpop.permute.xlu0 %2241
        %2243 = vrot.lane.b32.xlu0 %v928, 32
        %v2244 = vpop.permute.xlu0 %2243
        %2245 = vrot.lane.b32.xlu0 %v930, 32
        %v2246 = vpop.permute.xlu0 %2245
        %2247 = vrot.lane.b32.xlu0 %v932, 32
        %v2248 = vpop.permute.xlu0 %2247
        %2249 = vrot.lane.b32.xlu0 %v935, 32
        %v2250 = vpop.permute.xlu0 %2249
        %2251 = vrot.lane.b32.xlu0 %v937, 32
        %v2252 = vpop.permute.xlu0 %2251
        %2253 = vrot.lane.b32.xlu0 %v939, 32
        %v2254 = vpop.permute.xlu0 %2253
        %2255 = vrot.lane.b32.xlu0 %v941, 32
        %v2256 = vpop.permute.xlu0 %2255
        %2257 = vrot.lane.b32.xlu0 %v944, 32
        %v2258 = vpop.permute.xlu0 %2257
        %2259 = vrot.lane.b32.xlu0 %v946, 32
        %v2260 = vpop.permute.xlu0 %2259
        %2261 = vrot.lane.b32.xlu0 %v948, 32
        %v2262 = vpop.permute.xlu0 %2261
        %2263 = vrot.lane.b32.xlu0 %v950, 32
        %v2264 = vpop.permute.xlu0 %2263
        %2265 = vrot.lane.b32.xlu0 %v953, 32
        %v2266 = vpop.permute.xlu0 %2265
        %2267 = vrot.lane.b32.xlu0 %v955, 32
        %v2268 = vpop.permute.xlu0 %2267
        %2269 = vrot.lane.b32.xlu0 %v957, 32
        %v2270 = vpop.permute.xlu0 %2269
        %2271 = vrot.lane.b32.xlu0 %v959, 32
        %v2272 = vpop.permute.xlu0 %2271
        %2273 = vrot.lane.b32.xlu0 %v962, 32
        %v2274 = vpop.permute.xlu0 %2273
        %2275 = vrot.lane.b32.xlu0 %v964, 32
        %v2276 = vpop.permute.xlu0 %2275
        %2277 = vrot.lane.b32.xlu0 %v966, 32
        %v2278 = vpop.permute.xlu0 %2277
        %2279 = vrot.lane.b32.xlu0 %v968, 32
        %v2280 = vpop.permute.xlu0 %2279
        %2281 = vrot.lane.b32.xlu0 %v971, 32
        %v2282 = vpop.permute.xlu0 %2281
        %2283 = vrot.lane.b32.xlu0 %v973, 32
        %v2284 = vpop.permute.xlu0 %2283
        %2285 = vrot.lane.b32.xlu0 %v975, 32
        %v2286 = vpop.permute.xlu0 %2285
        %2287 = vrot.lane.b32.xlu0 %v977, 32
        %v2288 = vpop.permute.xlu0 %2287
        %2289 = vrot.lane.b32.xlu0 %v980, 32
        %v2290 = vpop.permute.xlu0 %2289
        %2291 = vrot.lane.b32.xlu0 %v982, 32
        %v2292 = vpop.permute.xlu0 %2291
        %2293 = vrot.lane.b32.xlu0 %v984, 32
        %v2294 = vpop.permute.xlu0 %2293
        %2295 = vrot.lane.b32.xlu0 %v986, 32
        %v2296 = vpop.permute.xlu0 %2295
        %2297 = vrot.lane.b32.xlu0 %v1579, 32
        %v2298 = vpop.permute.xlu0 %2297
        %2299 = vrot.lane.b32.xlu0 %v1581, 32
        %v2300 = vpop.permute.xlu0 %2299
        %2301 = vrot.lane.b32.xlu0 %v1583, 32
        %v2302 = vpop.permute.xlu0 %2301
        %2303 = vrot.lane.b32.xlu0 %v1585, 32
        %v2304 = vpop.permute.xlu0 %2303
        %2305 = vrot.lane.b32.xlu0 %v2178, 32
        %v2306 = vpop.permute.xlu0 %2305
        %2307 = vrot.lane.b32.xlu0 %v2180, 32
        %v2308 = vpop.permute.xlu0 %2307
        %2309 = vrot.lane.b32.xlu0 %v2182, 32
        %v2310 = vpop.permute.xlu0 %2309
        %2311 = vrot.lane.b32.xlu0 %v2184, 32
        %v2312 = vpop.permute.xlu0 %2311
        %vm2377 = vcmask 31744
        %v2378 = vsel %vm2377, %v335, %v651
        %v2379 = vsel %vm2377, %v336, %v653
        %v2380 = vsel %vm2377, %v337, %v655
        %v2381 = vsel %vm2377, %v338, %v657
        %v2382 = vsel %vm2377, %v340, %v659
        %v2383 = vsel %vm2377, %v341, %v661
        %v2384 = vsel %vm2377, %v342, %v663
        %v2385 = vsel %vm2377, %v343, %v665
        %v2386 = vsel %vm2377, %v345, %v667
        %v2387 = vsel %vm2377, %v346, %v669
        %v2388 = vsel %vm2377, %v347, %v671
        %v2389 = vsel %vm2377, %v348, %v673
        %v2390 = vsel %vm2377, %v350, %v675
        %v2391 = vsel %vm2377, %v351, %v677
        %v2392 = vsel %vm2377, %v352, %v679
        %v2393 = vsel %vm2377, %v353, %v681
        %v2394 = vsel %vm2377, %v355, %v683
        %v2395 = vsel %vm2377, %v356, %v685
        %v2396 = vsel %vm2377, %v357, %v687
        %v2397 = vsel %vm2377, %v358, %v689
        %v2398 = vsel %vm2377, %v360, %v691
        %v2399 = vsel %vm2377, %v361, %v693
        %v2400 = vsel %vm2377, %v362, %v695
        %v2401 = vsel %vm2377, %v363, %v697
        %v2402 = vsel %vm2377, %v365, %v699
        %v2403 = vsel %vm2377, %v366, %v701
        %v2404 = vsel %vm2377, %v367, %v703
        %v2405 = vsel %vm2377, %v368, %v705
        %v2406 = vsel %vm2377, %v370, %v707
        %v2407 = vsel %vm2377, %v371, %v709
        %v2408 = vsel %vm2377, %v372, %v711
        %v2409 = vsel %vm2377, %v373, %v713
        %v2410 = vsel %vm2377, %v375, %v715
        %v2411 = vsel %vm2377, %v376, %v717
        %v2412 = vsel %vm2377, %v377, %v719
        %v2413 = vsel %vm2377, %v378, %v721
        %v2414 = vsel %vm2377, %v380, %v723
        %v2415 = vsel %vm2377, %v381, %v725
        %v2416 = vsel %vm2377, %v382, %v727
        %v2417 = vsel %vm2377, %v383, %v729
        %v2418 = vsel %vm2377, %v385, %v731
        %v2419 = vsel %vm2377, %v386, %v733
        %v2420 = vsel %vm2377, %v387, %v735
        %v2421 = vsel %vm2377, %v388, %v737
        %v2422 = vsel %vm2377, %v390, %v739
        %v2423 = vsel %vm2377, %v391, %v741
        %v2424 = vsel %vm2377, %v392, %v743
        %v2425 = vsel %vm2377, %v393, %v745
        %v2426 = vsel %vm2377, %v395, %v747
        %v2427 = vsel %vm2377, %v396, %v749
        %v2428 = vsel %vm2377, %v397, %v751
        %v2429 = vsel %vm2377, %v398, %v753
        %v2430 = vsel %vm2377, %v400, %v755
        %v2431 = vsel %vm2377, %v401, %v757
        %v2432 = vsel %vm2377, %v402, %v759
        %v2433 = vsel %vm2377, %v403, %v761
        %v2434 = vsel %vm2377, %v405, %v763
        %v2435 = vsel %vm2377, %v406, %v765
        %v2436 = vsel %vm2377, %v407, %v767
        %v2437 = vsel %vm2377, %v408, %v769
        %v2438 = vsel %vm2377, %v410, %v771
        %v2439 = vsel %vm2377, %v411, %v773
        %v2440 = vsel %vm2377, %v412, %v775
        %v2441 = vsel %vm2377, %v413, %v777
        %vm2442 = vcmask 64512
        %v2443 = vsel %vm2442, %v2378, %v988
        %v2444 = vsel %vm2442, %v2379, %v990
        %v2445 = vsel %vm2442, %v2380, %v992
        %v2446 = vsel %vm2442, %v2381, %v994
        %v2447 = vsel %vm2442, %v2382, %v996
        %v2448 = vsel %vm2442, %v2383, %v998
        %v2449 = vsel %vm2442, %v2384, %v1000
        %v2450 = vsel %vm2442, %v2385, %v1002
        %v2451 = vsel %vm2442, %v2386, %v1004
        %v2452 = vsel %vm2442, %v2387, %v1006
        %v2453 = vsel %vm2442, %v2388, %v1008
        %v2454 = vsel %vm2442, %v2389, %v1010
        %v2455 = vsel %vm2442, %v2390, %v1012
        %v2456 = vsel %vm2442, %v2391, %v1014
        %v2457 = vsel %vm2442, %v2392, %v1016
        %v2458 = vsel %vm2442, %v2393, %v1018
        %v2459 = vsel %vm2442, %v2394, %v1020
        %v2460 = vsel %vm2442, %v2395, %v1022
        %v2461 = vsel %vm2442, %v2396, %v1024
        %v2462 = vsel %vm2442, %v2397, %v1026
        %v2463 = vsel %vm2442, %v2398, %v1028
        %v2464 = vsel %vm2442, %v2399, %v1030
        %v2465 = vsel %vm2442, %v2400, %v1032
        %v2466 = vsel %vm2442, %v2401, %v1034
        %v2467 = vsel %vm2442, %v2402, %v1036
        %v2468 = vsel %vm2442, %v2403, %v1038
        %v2469 = vsel %vm2442, %v2404, %v1040
        %v2470 = vsel %vm2442, %v2405, %v1042
        %v2471 = vsel %vm2442, %v2406, %v1044
        %v2472 = vsel %vm2442, %v2407, %v1046
        %v2473 = vsel %vm2442, %v2408, %v1048
        %v2474 = vsel %vm2442, %v2409, %v1050
        %v2475 = vsel %vm2442, %v2410, %v1052
        %v2476 = vsel %vm2442, %v2411, %v1054
        %v2477 = vsel %vm2442, %v2412, %v1056
        %v2478 = vsel %vm2442, %v2413, %v1058
        %v2479 = vsel %vm2442, %v2414, %v1060
        %v2480 = vsel %vm2442, %v2415, %v1062
        %v2481 = vsel %vm2442, %v2416, %v1064
        %v2482 = vsel %vm2442, %v2417, %v1066
        %v2483 = vsel %vm2442, %v2418, %v1068
        %v2484 = vsel %vm2442, %v2419, %v1070
        %v2485 = vsel %vm2442, %v2420, %v1072
        %v2486 = vsel %vm2442, %v2421, %v1074
        %v2487 = vsel %vm2442, %v2422, %v1076
        %v2488 = vsel %vm2442, %v2423, %v1078
        %v2489 = vsel %vm2442, %v2424, %v1080
        %v2490 = vsel %vm2442, %v2425, %v1082
        %v2491 = vsel %vm2442, %v2426, %v1084
        %v2492 = vsel %vm2442, %v2427, %v1086
        %v2493 = vsel %vm2442, %v2428, %v1088
        %v2494 = vsel %vm2442, %v2429, %v1090
        %v2495 = vsel %vm2442, %v2430, %v1092
        %v2496 = vsel %vm2442, %v2431, %v1094
        %v2497 = vsel %vm2442, %v2432, %v1096
        %v2498 = vsel %vm2442, %v2433, %v1098
        %v2499 = vsel %vm2442, %v2434, %v1100
        %v2500 = vsel %vm2442, %v2435, %v1102
        %v2501 = vsel %vm2442, %v2436, %v1104
        %v2502 = vsel %vm2442, %v2437, %v1106
        %v2503 = vsel %vm2442, %v2438, %v1108
        %v2504 = vsel %vm2442, %v2439, %v1110
        %v2505 = vsel %vm2442, %v2440, %v1112
        %v2506 = vsel %vm2442, %v2441, %v1114
        %vm2507 = vcmask 97280
        %v2508 = vsel %vm2507, %v2443, %v1184
        %v2509 = vsel %vm2507, %v2444, %v1186
        %v2510 = vsel %vm2507, %v2445, %v1188
        %v2511 = vsel %vm2507, %v2446, %v1190
        %v2512 = vsel %vm2507, %v2447, %v1192
        %v2513 = vsel %vm2507, %v2448, %v1194
        %v2514 = vsel %vm2507, %v2449, %v1196
        %v2515 = vsel %vm2507, %v2450, %v1198
        %v2516 = vsel %vm2507, %v2451, %v1200
        %v2517 = vsel %vm2507, %v2452, %v1202
        %v2518 = vsel %vm2507, %v2453, %v1204
        %v2519 = vsel %vm2507, %v2454, %v1206
        %v2520 = vsel %vm2507, %v2455, %v1208
        %v2521 = vsel %vm2507, %v2456, %v1210
        %v2522 = vsel %vm2507, %v2457, %v1212
        %v2523 = vsel %vm2507, %v2458, %v1214
        %v2524 = vsel %vm2507, %v2459, %v1216
        %v2525 = vsel %vm2507, %v2460, %v1218
        %v2526 = vsel %vm2507, %v2461, %v1220
        %v2527 = vsel %vm2507, %v2462, %v1222
        %v2528 = vsel %vm2507, %v2463, %v1224
        %v2529 = vsel %vm2507, %v2464, %v1226
        %v2530 = vsel %vm2507, %v2465, %v1228
        %v2531 = vsel %vm2507, %v2466, %v1230
        %v2532 = vsel %vm2507, %v2467, %v1232
        %v2533 = vsel %vm2507, %v2468, %v1234
        %v2534 = vsel %vm2507, %v2469, %v1236
        %v2535 = vsel %vm2507, %v2470, %v1238
        %v2536 = vsel %vm2507, %v2471, %v1240
        %v2537 = vsel %vm2507, %v2472, %v1242
        %v2538 = vsel %vm2507, %v2473, %v1244
        %v2539 = vsel %vm2507, %v2474, %v1246
        %v2540 = vsel %vm2507, %v2475, %v1248
        %v2541 = vsel %vm2507, %v2476, %v1250
        %v2542 = vsel %vm2507, %v2477, %v1252
        %v2543 = vsel %vm2507, %v2478, %v1254
        %v2544 = vsel %vm2507, %v2479, %v1256
        %v2545 = vsel %vm2507, %v2480, %v1258
        %v2546 = vsel %vm2507, %v2481, %v1260
        %v2547 = vsel %vm2507, %v2482, %v1262
        %v2548 = vsel %vm2507, %v2483, %v1264
        %v2549 = vsel %vm2507, %v2484, %v1266
        %v2550 = vsel %vm2507, %v2485, %v1268
        %v2551 = vsel %vm2507, %v2486, %v1270
        %v2552 = vsel %vm2507, %v2487, %v1272
        %v2553 = vsel %vm2507, %v2488, %v1274
        %v2554 = vsel %vm2507, %v2489, %v1276
        %v2555 = vsel %vm2507, %v2490, %v1278
        %v2556 = vsel %vm2507, %v2491, %v1280
        %v2557 = vsel %vm2507, %v2492, %v1282
        %v2558 = vsel %vm2507, %v2493, %v1284
        %v2559 = vsel %vm2507, %v2494, %v1286
        %v2560 = vsel %vm2507, %v2495, %v1288
        %v2561 = vsel %vm2507, %v2496, %v1290
        %v2562 = vsel %vm2507, %v2497, %v1292
        %v2563 = vsel %vm2507, %v2498, %v1294
        %v2564 = vsel %vm2507, %v2499, %v1296
        %v2565 = vsel %vm2507, %v2500, %v1298
        %v2566 = vsel %vm2507, %v2501, %v1300
        %v2567 = vsel %vm2507, %v2502, %v1302
        %v2568 = vsel %vm2507, %v2503, %v1304
        %v2569 = vsel %vm2507, %v2504, %v1306
        %v2570 = vsel %vm2507, %v2505, %v1308
        %v2571 = vsel %vm2507, %v2506, %v1310
        %vm2572 = vcmask 130048
        %v2573 = vsel %vm2572, %v2508, %v1386
        %v2574 = vsel %vm2572, %v2509, %v1388
        %v2575 = vsel %vm2572, %v2510, %v1390
        %v2576 = vsel %vm2572, %v2511, %v1392
        %v2577 = vsel %vm2572, %v2512, %v1394
        %v2578 = vsel %vm2572, %v2513, %v1396
        %v2579 = vsel %vm2572, %v2514, %v1398
        %v2580 = vsel %vm2572, %v2515, %v1400
        %v2581 = vsel %vm2572, %v2516, %v1402
        %v2582 = vsel %vm2572, %v2517, %v1404
        %v2583 = vsel %vm2572, %v2518, %v1406
        %v2584 = vsel %vm2572, %v2519, %v1408
        %v2585 = vsel %vm2572, %v2520, %v1410
        %v2586 = vsel %vm2572, %v2521, %v1412
        %v2587 = vsel %vm2572, %v2522, %v1414
        %v2588 = vsel %vm2572, %v2523, %v1416
        %v2589 = vsel %vm2572, %v2524, %v1418
        %v2590 = vsel %vm2572, %v2525, %v1420
        %v2591 = vsel %vm2572, %v2526, %v1422
        %v2592 = vsel %vm2572, %v2527, %v1424
        %v2593 = vsel %vm2572, %v2528, %v1426
        %v2594 = vsel %vm2572, %v2529, %v1428
        %v2595 = vsel %vm2572, %v2530, %v1430
        %v2596 = vsel %vm2572, %v2531, %v1432
        %v2597 = vsel %vm2572, %v2532, %v1434
        %v2598 = vsel %vm2572, %v2533, %v1436
        %v2599 = vsel %vm2572, %v2534, %v1438
        %v2600 = vsel %vm2572, %v2535, %v1440
        %v2601 = vsel %vm2572, %v2536, %v1442
        %v2602 = vsel %vm2572, %v2537, %v1444
        %v2603 = vsel %vm2572, %v2538, %v1446
        %v2604 = vsel %vm2572, %v2539, %v1448
        %v2605 = vsel %vm2572, %v2540, %v1450
        %v2606 = vsel %vm2572, %v2541, %v1452
        %v2607 = vsel %vm2572, %v2542, %v1454
        %v2608 = vsel %vm2572, %v2543, %v1456
        %v2609 = vsel %vm2572, %v2544, %v1458
        %v2610 = vsel %vm2572, %v2545, %v1460
        %v2611 = vsel %vm2572, %v2546, %v1462
        %v2612 = vsel %vm2572, %v2547, %v1464
        %v2613 = vsel %vm2572, %v2548, %v1466
        %v2614 = vsel %vm2572, %v2549, %v1468
        %v2615 = vsel %vm2572, %v2550, %v1470
        %v2616 = vsel %vm2572, %v2551, %v1472
        %v2617 = vsel %vm2572, %v2552, %v1474
        %v2618 = vsel %vm2572, %v2553, %v1476
        %v2619 = vsel %vm2572, %v2554, %v1478
        %v2620 = vsel %vm2572, %v2555, %v1480
        %v2621 = vsel %vm2572, %v2556, %v1482
        %v2622 = vsel %vm2572, %v2557, %v1484
        %v2623 = vsel %vm2572, %v2558, %v1486
        %v2624 = vsel %vm2572, %v2559, %v1488
        %v2625 = vsel %vm2572, %v2560, %v1490
        %v2626 = vsel %vm2572, %v2561, %v1492
        %v2627 = vsel %vm2572, %v2562, %v1494
        %v2628 = vsel %vm2572, %v2563, %v1496
        %v2629 = vsel %vm2572, %v2564, %v1498
        %v2630 = vsel %vm2572, %v2565, %v1500
        %v2631 = vsel %vm2572, %v2566, %v1502
        %v2632 = vsel %vm2572, %v2567, %v1504
        %v2633 = vsel %vm2572, %v2568, %v1506
        %v2634 = vsel %vm2572, %v2569, %v1508
        %v2635 = vsel %vm2572, %v2570, %v1510
        %v2636 = vsel %vm2572, %v2571, %v1512
        %vm2637 = vcmask 162816
        %v2638 = vsel %vm2637, %v2573, %v1587
        %v2639 = vsel %vm2637, %v2574, %v1589
        %v2640 = vsel %vm2637, %v2575, %v1591
        %v2641 = vsel %vm2637, %v2576, %v1593
        %v2642 = vsel %vm2637, %v2577, %v1595
        %v2643 = vsel %vm2637, %v2578, %v1597
        %v2644 = vsel %vm2637, %v2579, %v1599
        %v2645 = vsel %vm2637, %v2580, %v1601
        %v2646 = vsel %vm2637, %v2581, %v1603
        %v2647 = vsel %vm2637, %v2582, %v1605
        %v2648 = vsel %vm2637, %v2583, %v1607
        %v2649 = vsel %vm2637, %v2584, %v1609
        %v2650 = vsel %vm2637, %v2585, %v1611
        %v2651 = vsel %vm2637, %v2586, %v1613
        %v2652 = vsel %vm2637, %v2587, %v1615
        %v2653 = vsel %vm2637, %v2588, %v1617
        %v2654 = vsel %vm2637, %v2589, %v1619
        %v2655 = vsel %vm2637, %v2590, %v1621
        %v2656 = vsel %vm2637, %v2591, %v1623
        %v2657 = vsel %vm2637, %v2592, %v1625
        %v2658 = vsel %vm2637, %v2593, %v1627
        %v2659 = vsel %vm2637, %v2594, %v1629
        %v2660 = vsel %vm2637, %v2595, %v1631
        %v2661 = vsel %vm2637, %v2596, %v1633
        %v2662 = vsel %vm2637, %v2597, %v1635
        %v2663 = vsel %vm2637, %v2598, %v1637
        %v2664 = vsel %vm2637, %v2599, %v1639
        %v2665 = vsel %vm2637, %v2600, %v1641
        %v2666 = vsel %vm2637, %v2601, %v1643
        %v2667 = vsel %vm2637, %v2602, %v1645
        %v2668 = vsel %vm2637, %v2603, %v1647
        %v2669 = vsel %vm2637, %v2604, %v1649
        %v2670 = vsel %vm2637, %v2605, %v1651
        %v2671 = vsel %vm2637, %v2606, %v1653
        %v2672 = vsel %vm2637, %v2607, %v1655
        %v2673 = vsel %vm2637, %v2608, %v1657
        %v2674 = vsel %vm2637, %v2609, %v1659
        %v2675 = vsel %vm2637, %v2610, %v1661
        %v2676 = vsel %vm2637, %v2611, %v1663
        %v2677 = vsel %vm2637, %v2612, %v1665
        %v2678 = vsel %vm2637, %v2613, %v1667
        %v2679 = vsel %vm2637, %v2614, %v1669
        %v2680 = vsel %vm2637, %v2615, %v1671
        %v2681 = vsel %vm2637, %v2616, %v1673
        %v2682 = vsel %vm2637, %v2617, %v1675
        %v2683 = vsel %vm2637, %v2618, %v1677
        %v2684 = vsel %vm2637, %v2619, %v1679
        %v2685 = vsel %vm2637, %v2620, %v1681
        %v2686 = vsel %vm2637, %v2621, %v1683
        %v2687 = vsel %vm2637, %v2622, %v1685
        %v2688 = vsel %vm2637, %v2623, %v1687
        %v2689 = vsel %vm2637, %v2624, %v1689
        %v2690 = vsel %vm2637, %v2625, %v1691
        %v2691 = vsel %vm2637, %v2626, %v1693
        %v2692 = vsel %vm2637, %v2627, %v1695
        %v2693 = vsel %vm2637, %v2628, %v1697
        %v2694 = vsel %vm2637, %v2629, %v1699
        %v2695 = vsel %vm2637, %v2630, %v1701
        %v2696 = vsel %vm2637, %v2631, %v1703
        %v2697 = vsel %vm2637, %v2632, %v1705
        %v2698 = vsel %vm2637, %v2633, %v1707
        %v2699 = vsel %vm2637, %v2634, %v1709
        %v2700 = vsel %vm2637, %v2635, %v1711
        %v2701 = vsel %vm2637, %v2636, %v1713
        %vm2702 = vcmask 195584
        %v2703 = vsel %vm2702, %v2638, %v1783
        %v2704 = vsel %vm2702, %v2639, %v1785
        %v2705 = vsel %vm2702, %v2640, %v1787
        %v2706 = vsel %vm2702, %v2641, %v1789
        %v2707 = vsel %vm2702, %v2642, %v1791
        %v2708 = vsel %vm2702, %v2643, %v1793
        %v2709 = vsel %vm2702, %v2644, %v1795
        %v2710 = vsel %vm2702, %v2645, %v1797
        %v2711 = vsel %vm2702, %v2646, %v1799
        %v2712 = vsel %vm2702, %v2647, %v1801
        %v2713 = vsel %vm2702, %v2648, %v1803
        %v2714 = vsel %vm2702, %v2649, %v1805
        %v2715 = vsel %vm2702, %v2650, %v1807
        %v2716 = vsel %vm2702, %v2651, %v1809
        %v2717 = vsel %vm2702, %v2652, %v1811
        %v2718 = vsel %vm2702, %v2653, %v1813
        %v2719 = vsel %vm2702, %v2654, %v1815
        %v2720 = vsel %vm2702, %v2655, %v1817
        %v2721 = vsel %vm2702, %v2656, %v1819
        %v2722 = vsel %vm2702, %v2657, %v1821
        %v2723 = vsel %vm2702, %v2658, %v1823
        %v2724 = vsel %vm2702, %v2659, %v1825
        %v2725 = vsel %vm2702, %v2660, %v1827
        %v2726 = vsel %vm2702, %v2661, %v1829
        %v2727 = vsel %vm2702, %v2662, %v1831
        %v2728 = vsel %vm2702, %v2663, %v1833
        %v2729 = vsel %vm2702, %v2664, %v1835
        %v2730 = vsel %vm2702, %v2665, %v1837
        %v2731 = vsel %vm2702, %v2666, %v1839
        %v2732 = vsel %vm2702, %v2667, %v1841
        %v2733 = vsel %vm2702, %v2668, %v1843
        %v2734 = vsel %vm2702, %v2669, %v1845
        %v2735 = vsel %vm2702, %v2670, %v1847
        %v2736 = vsel %vm2702, %v2671, %v1849
        %v2737 = vsel %vm2702, %v2672, %v1851
        %v2738 = vsel %vm2702, %v2673, %v1853
        %v2739 = vsel %vm2702, %v2674, %v1855
        %v2740 = vsel %vm2702, %v2675, %v1857
        %v2741 = vsel %vm2702, %v2676, %v1859
        %v2742 = vsel %vm2702, %v2677, %v1861
        %v2743 = vsel %vm2702, %v2678, %v1863
        %v2744 = vsel %vm2702, %v2679, %v1865
        %v2745 = vsel %vm2702, %v2680, %v1867
        %v2746 = vsel %vm2702, %v2681, %v1869
        %v2747 = vsel %vm2702, %v2682, %v1871
        %v2748 = vsel %vm2702, %v2683, %v1873
        %v2749 = vsel %vm2702, %v2684, %v1875
        %v2750 = vsel %vm2702, %v2685, %v1877
        %v2751 = vsel %vm2702, %v2686, %v1879
        %v2752 = vsel %vm2702, %v2687, %v1881
        %v2753 = vsel %vm2702, %v2688, %v1883
        %v2754 = vsel %vm2702, %v2689, %v1885
        %v2755 = vsel %vm2702, %v2690, %v1887
        %v2756 = vsel %vm2702, %v2691, %v1889
        %v2757 = vsel %vm2702, %v2692, %v1891
        %v2758 = vsel %vm2702, %v2693, %v1893
        %v2759 = vsel %vm2702, %v2694, %v1895
        %v2760 = vsel %vm2702, %v2695, %v1897
        %v2761 = vsel %vm2702, %v2696, %v1899
        %v2762 = vsel %vm2702, %v2697, %v1901
        %v2763 = vsel %vm2702, %v2698, %v1903
        %v2764 = vsel %vm2702, %v2699, %v1905
        %v2765 = vsel %vm2702, %v2700, %v1907
        %v2766 = vsel %vm2702, %v2701, %v1909
        %vm2767 = vcmask 228352
        %v2768 = vsel %vm2767, %v2703, %v1985
        %v2769 = vsel %vm2767, %v2704, %v1987
        %v2770 = vsel %vm2767, %v2705, %v1989
        %v2771 = vsel %vm2767, %v2706, %v1991
        %v2772 = vsel %vm2767, %v2707, %v1993
        %v2773 = vsel %vm2767, %v2708, %v1995
        %v2774 = vsel %vm2767, %v2709, %v1997
        %v2775 = vsel %vm2767, %v2710, %v1999
        %v2776 = vsel %vm2767, %v2711, %v2001
        %v2777 = vsel %vm2767, %v2712, %v2003
        %v2778 = vsel %vm2767, %v2713, %v2005
        %v2779 = vsel %vm2767, %v2714, %v2007
        %v2780 = vsel %vm2767, %v2715, %v2009
        %v2781 = vsel %vm2767, %v2716, %v2011
        %v2782 = vsel %vm2767, %v2717, %v2013
        %v2783 = vsel %vm2767, %v2718, %v2015
        %v2784 = vsel %vm2767, %v2719, %v2017
        %v2785 = vsel %vm2767, %v2720, %v2019
        %v2786 = vsel %vm2767, %v2721, %v2021
        %v2787 = vsel %vm2767, %v2722, %v2023
        %v2788 = vsel %vm2767, %v2723, %v2025
        %v2789 = vsel %vm2767, %v2724, %v2027
        %v2790 = vsel %vm2767, %v2725, %v2029
        %v2791 = vsel %vm2767, %v2726, %v2031
        %v2792 = vsel %vm2767, %v2727, %v2033
        %v2793 = vsel %vm2767, %v2728, %v2035
        %v2794 = vsel %vm2767, %v2729, %v2037
        %v2795 = vsel %vm2767, %v2730, %v2039
        %v2796 = vsel %vm2767, %v2731, %v2041
        %v2797 = vsel %vm2767, %v2732, %v2043
        %v2798 = vsel %vm2767, %v2733, %v2045
        %v2799 = vsel %vm2767, %v2734, %v2047
        %v2800 = vsel %vm2767, %v2735, %v2049
        %v2801 = vsel %vm2767, %v2736, %v2051
        %v2802 = vsel %vm2767, %v2737, %v2053
        %v2803 = vsel %vm2767, %v2738, %v2055
        %v2804 = vsel %vm2767, %v2739, %v2057
        %v2805 = vsel %vm2767, %v2740, %v2059
        %v2806 = vsel %vm2767, %v2741, %v2061
        %v2807 = vsel %vm2767, %v2742, %v2063
        %v2808 = vsel %vm2767, %v2743, %v2065
        %v2809 = vsel %vm2767, %v2744, %v2067
        %v2810 = vsel %vm2767, %v2745, %v2069
        %v2811 = vsel %vm2767, %v2746, %v2071
        %v2812 = vsel %vm2767, %v2747, %v2073
        %v2813 = vsel %vm2767, %v2748, %v2075
        %v2814 = vsel %vm2767, %v2749, %v2077
        %v2815 = vsel %vm2767, %v2750, %v2079
        %v2816 = vsel %vm2767, %v2751, %v2081
        %v2817 = vsel %vm2767, %v2752, %v2083
        %v2818 = vsel %vm2767, %v2753, %v2085
        %v2819 = vsel %vm2767, %v2754, %v2087
        %v2820 = vsel %vm2767, %v2755, %v2089
        %v2821 = vsel %vm2767, %v2756, %v2091
        %v2822 = vsel %vm2767, %v2757, %v2093
        %v2823 = vsel %vm2767, %v2758, %v2095
        %v2824 = vsel %vm2767, %v2759, %v2097
        %v2825 = vsel %vm2767, %v2760, %v2099
        %v2826 = vsel %vm2767, %v2761, %v2101
        %v2827 = vsel %vm2767, %v2762, %v2103
        %v2828 = vsel %vm2767, %v2763, %v2105
        %v2829 = vsel %vm2767, %v2764, %v2107
        %v2830 = vsel %vm2767, %v2765, %v2109
        %v2831 = vsel %vm2767, %v2766, %v2111
        %vm2832 = vcmask 261120
        %v2833 = vsel %vm2832, %v2768, %v2186
        %v2834 = vsel %vm2832, %v2769, %v2188
        %v2835 = vsel %vm2832, %v2770, %v2190
        %v2836 = vsel %vm2832, %v2771, %v2192
        %v2837 = vsel %vm2832, %v2772, %v2194
        %v2838 = vsel %vm2832, %v2773, %v2196
        %v2839 = vsel %vm2832, %v2774, %v2198
        %v2840 = vsel %vm2832, %v2775, %v2200
        %v2841 = vsel %vm2832, %v2776, %v2202
        %v2842 = vsel %vm2832, %v2777, %v2204
        %v2843 = vsel %vm2832, %v2778, %v2206
        %v2844 = vsel %vm2832, %v2779, %v2208
        %v2845 = vsel %vm2832, %v2780, %v2210
        %v2846 = vsel %vm2832, %v2781, %v2212
        %v2847 = vsel %vm2832, %v2782, %v2214
        %v2848 = vsel %vm2832, %v2783, %v2216
        %v2849 = vsel %vm2832, %v2784, %v2218
        %v2850 = vsel %vm2832, %v2785, %v2220
        %v2851 = vsel %vm2832, %v2786, %v2222
        %v2852 = vsel %vm2832, %v2787, %v2224
        %v2853 = vsel %vm2832, %v2788, %v2226
        %v2854 = vsel %vm2832, %v2789, %v2228
        %v2855 = vsel %vm2832, %v2790, %v2230
        %v2856 = vsel %vm2832, %v2791, %v2232
        %v2857 = vsel %vm2832, %v2792, %v2234
        %v2858 = vsel %vm2832, %v2793, %v2236
        %v2859 = vsel %vm2832, %v2794, %v2238
        %v2860 = vsel %vm2832, %v2795, %v2240
        %v2861 = vsel %vm2832, %v2796, %v2242
        %v2862 = vsel %vm2832, %v2797, %v2244
        %v2863 = vsel %vm2832, %v2798, %v2246
        %v2864 = vsel %vm2832, %v2799, %v2248
        %v2865 = vsel %vm2832, %v2800, %v2250
        %v2866 = vsel %vm2832, %v2801, %v2252
        %v2867 = vsel %vm2832, %v2802, %v2254
        %v2868 = vsel %vm2832, %v2803, %v2256
        %v2869 = vsel %vm2832, %v2804, %v2258
        %v2870 = vsel %vm2832, %v2805, %v2260
        %v2871 = vsel %vm2832, %v2806, %v2262
        %v2872 = vsel %vm2832, %v2807, %v2264
        %v2873 = vsel %vm2832, %v2808, %v2266
        %v2874 = vsel %vm2832, %v2809, %v2268
        %v2875 = vsel %vm2832, %v2810, %v2270
        %v2876 = vsel %vm2832, %v2811, %v2272
        %v2877 = vsel %vm2832, %v2812, %v2274
        %v2878 = vsel %vm2832, %v2813, %v2276
        %v2879 = vsel %vm2832, %v2814, %v2278
        %v2880 = vsel %vm2832, %v2815, %v2280
        %v2881 = vsel %vm2832, %v2816, %v2282
        %v2882 = vsel %vm2832, %v2817, %v2284
        %v2883 = vsel %vm2832, %v2818, %v2286
        %v2884 = vsel %vm2832, %v2819, %v2288
        %v2885 = vsel %vm2832, %v2820, %v2290
        %v2886 = vsel %vm2832, %v2821, %v2292
        %v2887 = vsel %vm2832, %v2822, %v2294
        %v2888 = vsel %vm2832, %v2823, %v2296
        %v2889 = vsel %vm2832, %v2824, %v2298
        %v2890 = vsel %vm2832, %v2825, %v2300
        %v2891 = vsel %vm2832, %v2826, %v2302
        %v2892 = vsel %vm2832, %v2827, %v2304
        %v2893 = vsel %vm2832, %v2828, %v2306
        %v2894 = vsel %vm2832, %v2829, %v2308
        %v2895 = vsel %vm2832, %v2830, %v2310
        %v2896 = vsel %vm2832, %v2831, %v2312
        %v2897 = vld [vmem:[%s2] sm:$0xff]
        %vm2898 = vcmask 293888
        %v2900 = vsel %vm2898, %v2897, 0
        %v2903 = vsel %vm2898, %v2833, 0
        %v2906 = vsel %vm2898, %v2834, 0
        %v2909 = vsel %vm2898, %v2835, 0
        %v2912 = vsel %vm2898, %v2836, 0
        %v2915 = vsel %vm2898, %v2837, 0
        %v2918 = vsel %vm2898, %v2838, 0
        %v2921 = vsel %vm2898, %v2839, 0
        %v2924 = vsel %vm2898, %v2840, 0
        %v2927 = vsel %vm2898, %v2841, 0
        %v2930 = vsel %vm2898, %v2842, 0
        %v2933 = vsel %vm2898, %v2843, 0
        %v2936 = vsel %vm2898, %v2844, 0
        %v2939 = vsel %vm2898, %v2845, 0
        %v2942 = vsel %vm2898, %v2846, 0
        %v2945 = vsel %vm2898, %v2847, 0
        %v2948 = vsel %vm2898, %v2848, 0
        %v2951 = vsel %vm2898, %v2849, 0
        %v2954 = vsel %vm2898, %v2850, 0
        %v2957 = vsel %vm2898, %v2851, 0
        %v2960 = vsel %vm2898, %v2852, 0
        %v2963 = vsel %vm2898, %v2853, 0
        %v2966 = vsel %vm2898, %v2854, 0
        %v2969 = vsel %vm2898, %v2855, 0
        %v2972 = vsel %vm2898, %v2856, 0
        %v2975 = vsel %vm2898, %v2857, 0
        %v2978 = vsel %vm2898, %v2858, 0
        %v2981 = vsel %vm2898, %v2859, 0
        %v2984 = vsel %vm2898, %v2860, 0
        %v2987 = vsel %vm2898, %v2861, 0
        %v2990 = vsel %vm2898, %v2862, 0
        %v2993 = vsel %vm2898, %v2863, 0
        %v2996 = vsel %vm2898, %v2864, 0
        %v2999 = vsel %vm2898, %v2865, 0
        %v3002 = vsel %vm2898, %v2866, 0
        %v3005 = vsel %vm2898, %v2867, 0
        %v3008 = vsel %vm2898, %v2868, 0
        %v3011 = vsel %vm2898, %v2869, 0
        %v3014 = vsel %vm2898, %v2870, 0
        %v3017 = vsel %vm2898, %v2871, 0
        %v3020 = vsel %vm2898, %v2872, 0
        %v3023 = vsel %vm2898, %v2873, 0
        %v3026 = vsel %vm2898, %v2874, 0
        %v3029 = vsel %vm2898, %v2875, 0
        %v3032 = vsel %vm2898, %v2876, 0
        %v3035 = vsel %vm2898, %v2877, 0
        %v3038 = vsel %vm2898, %v2878, 0
        %v3041 = vsel %vm2898, %v2879, 0
        %v3044 = vsel %vm2898, %v2880, 0
        %v3047 = vsel %vm2898, %v2881, 0
        %v3050 = vsel %vm2898, %v2882, 0
        %v3053 = vsel %vm2898, %v2883, 0
        %v3056 = vsel %vm2898, %v2884, 0
        %v3059 = vsel %vm2898, %v2885, 0
        %v3062 = vsel %vm2898, %v2886, 0
        %v3065 = vsel %vm2898, %v2887, 0
        %v3068 = vsel %vm2898, %v2888, 0
        %v3071 = vsel %vm2898, %v2889, 0
        %v3074 = vsel %vm2898, %v2890, 0
        %v3077 = vsel %vm2898, %v2891, 0
        %v3080 = vsel %vm2898, %v2892, 0
        %v3083 = vsel %vm2898, %v2893, 0
        %v3086 = vsel %vm2898, %v2894, 0
        %v3089 = vsel %vm2898, %v2895, 0
        %v3092 = vsel %vm2898, %v2896, 0
        %3094 = vmatpush.xpose.msra.mxu0 %v2948
        %3095 = vmatpush.xpose.msra.mxu0 %v2945
        %3096 = vmatpush.xpose.msra.mxu0 %v2942
        %3097 = vmatpush.xpose.msra.mxu0 %v2939
        %3098 = vmatpush.xpose.msra.mxu0 %v2936
        %3099 = vmatpush.xpose.msra.mxu0 %v2933
        %3100 = vmatpush.xpose.msra.mxu0 %v2930
        %3101 = vmatpush.xpose.msra.mxu0 %v2927
        %3102 = vmatpush.xpose.msra.mxu0 %v2924
        %3103 = vmatpush.xpose.msra.mxu0 %v2921
        %3104 = vmatpush.xpose.msra.mxu0 %v2918
        %3105 = vmatpush.xpose.msra.mxu0 %v2915
        %3106 = vmatpush.xpose.msra.mxu0 %v2912
        %3107 = vmatpush.xpose.msra.mxu0 %v2909
        %3108 = vmatpush.xpose.msra.mxu0 %v2906
        %3109 = vmatpush.xpose.msra.mxu0 %v2903
        %3110 = vmatmul.f32.gmra.mxu0 %v2900
        %v3111 = vpop.f32.mrf.mxu0
        %v3112 = vadd.f32 0.0, %v3111
        %3113 = vdwg.mxu0
        %3114 = vmatpush.xpose.msra.mxu0 %v2996
        %3115 = vmatpush.xpose.msra.mxu0 %v2993
        %3116 = vmatpush.xpose.msra.mxu0 %v2990
        %3117 = vmatpush.xpose.msra.mxu0 %v2987
        %3118 = vmatpush.xpose.msra.mxu0 %v2984
        %3119 = vmatpush.xpose.msra.mxu0 %v2981
        %3120 = vmatpush.xpose.msra.mxu0 %v2978
        %3121 = vmatpush.xpose.msra.mxu0 %v2975
        %3122 = vmatpush.xpose.msra.mxu0 %v2972
        %3123 = vmatpush.xpose.msra.mxu0 %v2969
        %3124 = vmatpush.xpose.msra.mxu0 %v2966
        %3125 = vmatpush.xpose.msra.mxu0 %v2963
        %3126 = vmatpush.xpose.msra.mxu0 %v2960
        %3127 = vmatpush.xpose.msra.mxu0 %v2957
        %3128 = vmatpush.xpose.msra.mxu0 %v2954
        %3129 = vmatpush.xpose.msra.mxu0 %v2951
        %3130 = vmatmul.f32.gmra.mxu0 %v2900
        %v3131 = vpop.f32.mrf.mxu0
        %v3132 = vadd.f32 0.0, %v3131
        %3133 = vdwg.mxu0
        %3134 = vmatpush.xpose.msra.mxu0 %v3044
        %3135 = vmatpush.xpose.msra.mxu0 %v3041
        %3136 = vmatpush.xpose.msra.mxu0 %v3038
        %3137 = vmatpush.xpose.msra.mxu0 %v3035
        %3138 = vmatpush.xpose.msra.mxu0 %v3032
        %3139 = vmatpush.xpose.msra.mxu0 %v3029
        %3140 = vmatpush.xpose.msra.mxu0 %v3026
        %3141 = vmatpush.xpose.msra.mxu0 %v3023
        %3142 = vmatpush.xpose.msra.mxu0 %v3020
        %3143 = vmatpush.xpose.msra.mxu0 %v3017
        %3144 = vmatpush.xpose.msra.mxu0 %v3014
        %3145 = vmatpush.xpose.msra.mxu0 %v3011
        %3146 = vmatpush.xpose.msra.mxu0 %v3008
        %3147 = vmatpush.xpose.msra.mxu0 %v3005
        %3148 = vmatpush.xpose.msra.mxu0 %v3002
        %3149 = vmatpush.xpose.msra.mxu0 %v2999
        %3150 = vmatmul.f32.gmra.mxu0 %v2900
        %v3151 = vpop.f32.mrf.mxu0
        %v3152 = vadd.f32 0.0, %v3151
        %3153 = vdwg.mxu0
        %3154 = vmatpush.xpose.msra.mxu0 %v3092
        %3155 = vmatpush.xpose.msra.mxu0 %v3089
        %3156 = vmatpush.xpose.msra.mxu0 %v3086
        %3157 = vmatpush.xpose.msra.mxu0 %v3083
        %3158 = vmatpush.xpose.msra.mxu0 %v3080
        %3159 = vmatpush.xpose.msra.mxu0 %v3077
        %3160 = vmatpush.xpose.msra.mxu0 %v3074
        %3161 = vmatpush.xpose.msra.mxu0 %v3071
        %3162 = vmatpush.xpose.msra.mxu0 %v3068
        %3163 = vmatpush.xpose.msra.mxu0 %v3065
        %3164 = vmatpush.xpose.msra.mxu0 %v3062
        %3165 = vmatpush.xpose.msra.mxu0 %v3059
        %3166 = vmatpush.xpose.msra.mxu0 %v3056
        %3167 = vmatpush.xpose.msra.mxu0 %v3053
        %3168 = vmatpush.xpose.msra.mxu0 %v3050
        %3169 = vmatpush.xpose.msra.mxu0 %v3047
        %3170 = vmatmul.f32.gmra.mxu0 %v2900
        %v3171 = vpop.f32.mrf.mxu0
        %v3172 = vadd.f32 0.0, %v3171
        %3173 = vdwg.mxu0
        %v3174 = vld [vmem:[%s3] sm:$0xff]
        %3176 = vset.pattern.permute.xlu0 0
        %3177 = vperm.xlu0 %3176, %v3174
        %v3178 = vpop.permute.xlu0 %3177
        %v3180 = vmul.f32 %v3112, %v3178
        %v3181 = vmul.f32 %v3132, %v3178
        %v3182 = vmul.f32 %v3152, %v3178
        %v3183 = vmul.f32 %v3172, %v3178
        %v3184 = vld [vmem:[%s4] sm:$0xff]
        %3186 = vset.pattern.permute.xlu0 0
        %3187 = vperm.xlu0 %3186, %v3184
        %v3188 = vpop.permute.xlu0 %3187
        %v3190 = vadd.f32 %v3180, %v3188
        %v3191 = vadd.f32 %v3181, %v3188
        %v3192 = vadd.f32 %v3182, %v3188
        %v3193 = vadd.f32 %v3183, %v3188
        %v3194 = vxor.u32 %v3190, 2147483648
        %v3195 = vxor.u32 %v3191, 2147483648
        %v3196 = vxor.u32 %v3192, 2147483648
        %v3197 = vxor.u32 %v3193, 2147483648
        %v3198 = vmul.f32 %v3194, 1.442695
        %v3199 = vpow.pop %v3198
        %v3200 = vmul.f32 %v3195, 1.442695
        %v3201 = vpow.pop %v3200
        %v3202 = vmul.f32 %v3196, 1.442695
        %v3203 = vpow.pop %v3202
        %v3204 = vmul.f32 %v3197, 1.442695
        %v3205 = vpow.pop %v3204
        %v3206 = vadd.f32 %v3199, 1.0
        %v3207 = vadd.f32 %v3201, 1.0
        %v3208 = vadd.f32 %v3203, 1.0
        %v3209 = vadd.f32 %v3205, 1.0
        %v3210 = vrcp.pop %v3206
        %v3211 = vmul.f32 %v3206, %v3210
        %v3212 = vsub.f32 1.0, %v3211
        %v3213 = vmul.f32 %v3210, %v3212
        %v3214 = vadd.f32 %v3210, %v3213
        %vm3215 = vweird.f32 %v3206
        %vm3216 = vweird.f32 %v3210
        %vm3217 = vmor %vm3215, %vm3216
        %v3218 = vsel %vm3217, %v3210, %v3214
        %v3219 = vand.u32 2147483647, %v3206
        %vm3220 = vcmp.eq.f32.partialorder %v3219, 8.507059e+37
        %v3221 = vand.u32 %v3206, 2147483648
        %v3222 = vor.u32 1.1754944e-38, %v3221
        %v3223 = vsel %vm3220, %v3222, %v3218
        %v3224 = vmul.f32 1.0, %v3223
        %v3225 = vrcp.pop %v3207
        %v3226 = vmul.f32 %v3207, %v3225
        %v3227 = vsub.f32 1.0, %v3226
        %v3228 = vmul.f32 %v3225, %v3227
        %v3229 = vadd.f32 %v3225, %v3228
        %vm3230 = vweird.f32 %v3207
        %vm3231 = vweird.f32 %v3225
        %vm3232 = vmor %vm3230, %vm3231
        %v3233 = vsel %vm3232, %v3225, %v3229
        %v3234 = vand.u32 2147483647, %v3207
        %vm3235 = vcmp.eq.f32.partialorder %v3234, 8.507059e+37
        %v3236 = vand.u32 %v3207, 2147483648
        %v3237 = vor.u32 1.1754944e-38, %v3236
        %v3238 = vsel %vm3235, %v3237, %v3233
        %v3239 = vmul.f32 1.0, %v3238
        %v3240 = vrcp.pop %v3208
        %v3241 = vmul.f32 %v3208, %v3240
        %v3242 = vsub.f32 1.0, %v3241
        %v3243 = vmul.f32 %v3240, %v3242
        %v3244 = vadd.f32 %v3240, %v3243
        %vm3245 = vweird.f32 %v3208
        %vm3246 = vweird.f32 %v3240
        %vm3247 = vmor %vm3245, %vm3246
        %v3248 = vsel %vm3247, %v3240, %v3244
        %v3249 = vand.u32 2147483647, %v3208
        %vm3250 = vcmp.eq.f32.partialorder %v3249, 8.507059e+37
        %v3251 = vand.u32 %v3208, 2147483648
        %v3252 = vor.u32 1.1754944e-38, %v3251
        %v3253 = vsel %vm3250, %v3252, %v3248
        %v3254 = vmul.f32 1.0, %v3253
        %v3255 = vrcp.pop %v3209
        %v3256 = vmul.f32 %v3209, %v3255
        %v3257 = vsub.f32 1.0, %v3256
        %v3258 = vmul.f32 %v3255, %v3257
        %v3259 = vadd.f32 %v3255, %v3258
        %vm3260 = vweird.f32 %v3209
        %vm3261 = vweird.f32 %v3255
        %vm3262 = vmor %vm3260, %vm3261
        %v3263 = vsel %vm3262, %v3255, %v3259
        %v3264 = vand.u32 2147483647, %v3209
        %vm3265 = vcmp.eq.f32.partialorder %v3264, 8.507059e+37
        %v3266 = vand.u32 %v3209, 2147483648
        %v3267 = vor.u32 1.1754944e-38, %v3266
        %v3268 = vsel %vm3265, %v3267, %v3263
        %v3269 = vmul.f32 1.0, %v3268
        %v3270 = vmul.f32 %v3190, %v3224
        %v3271 = vmul.f32 %v3191, %v3239
        %v3272 = vmul.f32 %v3192, %v3254
        %v3273 = vmul.f32 %v3193, %v3269
        %3274 = vst [vmem:[%s297] sm:$0xff] %v3270
        %3275 = vst [vmem:[%s297 + $0x8] sm:$0xff] %v3271
        %3276 = vst [vmem:[%s297 + $0x10] sm:$0xff] %v3272
        %3277 = vst [vmem:[%s297 + $0x18] sm:$0xff] %v3273
        %s3278 = sand.u32 %s164, 1
        %s3279 = scalar_lea.sflag [#allocation3], %s3278
        %s3280 = sand.u32 %s164, 1
        %s3281 = smul.addr %s3280, 32
        %s3282 = scalar_lea.vmem [#allocation2], %s3281
        // Predicated region
        $region41: #{tpu_custom_call.1} parent=39 // pred_check
          %p3283 = pneg %p174
        $region42: #{tpu_custom_call.1} parent=39 // pred_check_branch
          %3285 = sbr.rel (%p3283) target = $region44
        $region43: #{tpu_custom_call.1} parent=39 // pred_region
          %s3286 = smul.u32 4, %s24
          %3288 = vsyncadd %s3279, 0
          %s3289 = smul.addr %s23, 8
          %s3290 = sadd.s32 %s3286, %s3289
          %s3291 = smul.addr %s3290, 8
          %s3292 = scalar_lea.hbm %s5, %s3291
          %s3294 = sshll.u32 %s3282, 4
          %s3295 = int_to_ptr.vmem [resolvable:$true] %s3294
          %s3296 = sshll.u32 %s3292, 4
          %s3297 = int_to_ptr.hbm [resolvable:$true] %s3296
          %3299 = dma.vmem_to_hbm [thread:$0]  %s3295, 512, %s3297, %s3279
        $region44: #{tpu_custom_call.1} parent=39 // pred_fallthru
          _
      $region40: #{tpu_custom_call.1} parent=5 // pred_fallthru
        _
      %p3300 = scmp.le.s32.totalorder 2, %s14
      // Predicated region
      $region45: #{tpu_custom_call.1} parent=5 // pred_check
        %p3301 = pneg %p3300
      $region46: #{tpu_custom_call.1} parent=5 // pred_check_branch
        %3303 = sbr.rel (%p3301) target = $region48
      $region47: #{tpu_custom_call.1} parent=5 // pred_region
        %s3304 = ssub.s32 %s14, 2
        // Predicated region
        $region49: #{tpu_custom_call.1} parent=47 // pred_check
          %p3305 = pneg %p180
        $region50: #{tpu_custom_call.1} parent=47 // pred_check_branch
          %3307 = sbr.rel (%p3305) target = $region52
        $region51: #{tpu_custom_call.1} parent=47 // pred_region
          %s3308 = sand.u32 %s165, 1
          %s3309 = scalar_lea.sflag [#allocation3], %s3308
          %s3310 = sand.u32 %s165, 1
          %s3311 = smul.addr %s3310, 32
          %s3312 = scalar_lea.vmem [#allocation2], %s3311
          %3314 = dma.done %s3309, 512
        $region52: #{tpu_custom_call.1} parent=47 // pred_fallthru
          _
      $region48: #{tpu_custom_call.1} parent=5 // pred_fallthru
        _
    $region6: #{tpu_custom_call.1} parent=1 // loop_footer
      %s18 = sadd.s32 1, %s14
    $region7: #{tpu_custom_call.1} parent=1 // loop_footer_branch
      %13 = sbr.rel target = $region3
    $region8: #{tpu_custom_call.1} parent=1 // loop_exit
      _
    %3315 = vsyncpa [#allocation3], 1
    %s3316 = scalar_lea.sflag [#allocation3], 1
    %3317 = vsyncpa %s3316, 1

</llo_original>
